<compile_context>
chip_gen: v7x
topology: tpu7x:2x2x1
jax: 0.10.0
libtpu: 0.0.40
codegen_flags: <defaults>
</compile_context>

<pallas_src>
import functools

import jax
import jax.numpy as jnp
from jax.experimental import pallas as pl
from jax.experimental.pallas import tpu as pltpu

_HIGHEST = jax.lax.Precision.HIGHEST
_NEG_INF = -1e30  # finite "minus infinity": avoids inf/nan edge cases in exp()


def _round_up(x, m):
    return ((x + m - 1) // m) * m


# -----------------------------------------------------------------------------
# Kernel
# -----------------------------------------------------------------------------
def attention_kernel(
    x1_ref,    # (1, C, tq)   channels-first query-input tile
    kv_ref,    # (1, 2C, tk)  channels-first PRE-PROJECTED [K^T ; V^T] tile
    wq_ref,    # (C, C)       fused query_conv @ in_proj_q (1/sqrt(D) folded in)
    bq_ref,    # (C, 1)       fused query bias (f32)
    wout_ref,  # (C, C)       fused output_conv @ out_proj
    bout_ref,  # (C, 1)       fused output bias (f32)
    o_ref,     # (1, C, tq)   channels-first output tile (lane-dense)
    q_sc,      # (C, tq)      scratch: projected Q (compute dtype)
    acc_sc,    # (C, tq)      scratch: attention accumulator, heads packed, f32
    m_sc,      # (H, 1, tq)   scratch: running row max, f32
    l_sc,      # (H, 1, tq)   scratch: running softmax denominator, f32
    *, num_heads, kv_valid, mask_keys,
):
    ki = pl.program_id(2)
    nk = pl.num_programs(2)
    C = x1_ref.shape[1]
    D = C // num_heads
    tk = kv_ref.shape[2]

    @pl.when(ki == 0)
    def _init():
        # Fused (query_conv -> MHA q in_proj -> *1/sqrt(D)), channels-first:
        #   q = Wq @ x1_tile + bq   -> (C, tq);   computed once per (b, qi).
        q = jnp.dot(wq_ref[...], x1_ref[0],
                    preferred_element_type=jnp.float32) + bq_ref[...]
        q_sc[...] = q.astype(q_sc.dtype)
        m_sc[...] = jnp.full(m_sc.shape, _NEG_INF, jnp.float32)
        l_sc[...] = jnp.zeros(l_sc.shape, jnp.float32)
        acc_sc[...] = jnp.zeros(acc_sc.shape, jnp.float32)

    kv = kv_ref[0]        # (2C, tk): rows [0:C] = K^T, rows [C:2C] = V^T
    q = q_sc[...]         # (C, tq)

    if mask_keys:
        # Padded key positions (>= kv_valid) are masked out of the softmax.
        key_ids = jax.lax.broadcasted_iota(jnp.int32, (tk, 1), 0) + ki * tk
        key_ok = key_ids < kv_valid                                  # (tk, 1)

    # Static unroll over heads (fine for small H).  For num_heads > ~4, switch to
    # lax.fori_loop over heads to bound vreg live ranges.
    for h in range(num_heads):
        qh = q[h * D:(h + 1) * D, :]               # (D, tq)
        kh = kv[h * D:(h + 1) * D, :]              # (D, tk)  == K_h^T
        vh = kv[C + h * D:C + (h + 1) * D, :]      # (D, tk)  == V_h^T

        # Scores TRANSPOSED: (tk, tq).  The softmax axis (tk) lives on sublanes,
        # so all statistics come out as lane-dense (1, tq) vectors and broadcast
        # naturally over the channels-first (D, tq) accumulator.
        s_t = jax.lax.dot_general(kh, qh, (((0,), (0,)), ((), ())),
                                  preferred_element_type=jnp.float32)
        if mask_keys:
            s_t = jnp.where(key_ok, s_t, _NEG_INF)

        m_prev = m_sc[h]                                             # (1, tq)
        m_new = jnp.maximum(m_prev, jnp.max(s_t, axis=0, keepdims=True))
        alpha = jnp.exp(m_prev - m_new)                              # (1, tq)
        p = jnp.exp(s_t - m_new)                                     # (tk, tq)
        l_sc[h] = alpha * l_sc[h] + jnp.sum(p, axis=0, keepdims=True)
        m_sc[h] = m_new

        # V_h^T @ P -> (D, tq), channels-first accumulation (f32).
        pv = jax.lax.dot_general(vh, p.astype(vh.dtype),
                                 (((1,), (0,)), ((), ())),
                                 preferred_element_type=jnp.float32)
        acc_sc[h * D:(h + 1) * D, :] = (
            alpha * acc_sc[h * D:(h + 1) * D, :] + pv)

    @pl.when(ki == nk - 1)
    def _finalize():
        # Exact per-head softmax normalization (correctness fix: no approx
        # reciprocal), heads packed along channels -> one C-wide fused GEMM
        # (out_proj folded with output_conv).
        attn = jnp.concatenate(
            [acc_sc[h * D:(h + 1) * D, :] * (1.0 / l_sc[h])
             for h in range(num_heads)], axis=0)                     # (C, tq)
        out = jnp.dot(wout_ref[...], attn.astype(wout_ref.dtype),
                      preferred_element_type=jnp.float32) + bout_ref[...]
        o_ref[0] = out.astype(o_ref.dtype)


# -----------------------------------------------------------------------------
# Parameters
# -----------------------------------------------------------------------------
def init_params(key, num_channels):
    C = num_channels
    ks = jax.random.split(key, 12)
    s = 0.3

    def w(k, shape):
        return jax.random.normal(k, shape, jnp.float32) * s

    return dict(
        # Conv2d(C, C, 1): weight flattened to (C_out, C_in), bias (C,)
        wq_c=w(ks[0], (C, C)), bq_c=w(ks[1], (C,)),
        wk_c=w(ks[2], (C, C)), bk_c=w(ks[3], (C,)),
        wv_c=w(ks[4], (C, C)), bv_c=w(ks[5], (C,)),
        # nn.MultiheadAttention in_proj_weight (3C, C), in_proj_bias (3C,)
        in_proj_w=w(ks[6], (3 * C, C)), in_proj_b=w(ks[7], (3 * C,)),
        # out_proj Linear(C, C)
        wo=w(ks[8], (C, C)), bo=w(ks[9], (C,)),
        # output_conv Conv2d(C, C, 1)
        wout_c=w(ks[10], (C, C)), bout_c=w(ks[11], (C,)),
    )


def _fuse_params(params, C, num_heads):
    """Fold the 1x1 convs into the MHA projections (and 1/sqrt(D) into Q)."""
    D = C // num_heads
    scale = 1.0 / jnp.sqrt(jnp.float32(D))

    def mm(a, b):
        return jnp.matmul(a, b, precision=_HIGHEST)

    w_in, b_in = params["in_proj_w"], params["in_proj_b"]
    wq_in, wk_in, wv_in = w_in[:C], w_in[C:2 * C], w_in[2 * C:]
    bq_in, bk_in, bv_in = b_in[:C], b_in[C:2 * C], b_in[2 * C:]

    # (x @ Wc^T + bc) @ Wi^T + bi == x @ (Wi @ Wc)^T + (Wi @ bc + bi)
    wq_f = mm(wq_in, params["wq_c"]) * scale                         # (C, C)
    bq_f = ((wq_in @ params["bq_c"] + bq_in) * scale)[:, None]       # (C, 1)

    wk_f = mm(wk_in, params["wk_c"])
    bk_f = wk_in @ params["bk_c"] + bk_in
    wv_f = mm(wv_in, params["wv_c"])
    bv_f = wv_in @ params["bv_c"] + bv_in
    wkv_f = jnp.concatenate([wk_f, wv_f], axis=0)                    # (2C, C)
    bkv_f = jnp.concatenate([bk_f, bv_f], axis=0)[:, None]           # (2C, 1)

    # (a @ Wo^T + bo) @ Woc^T + boc == a @ (Woc @ Wo)^T + (Woc @ bo + boc)
    wout_f = mm(params["wout_c"], params["wo"])                      # (C, C)
    bout_f = (params["wout_c"] @ params["bo"] + params["bout_c"])[:, None]

    return wq_f, bq_f, wkv_f, bkv_f, wout_f, bout_f


# -----------------------------------------------------------------------------
# Wrapper
# -----------------------------------------------------------------------------
def attention_forward(x1, x2, params, num_heads, *,
                      compute_dtype=jnp.bfloat16, max_tile=512):
    B, C, H, W = x1.shape
    assert C % num_heads == 0
    L = H * W
    out_dtype = x1.dtype

    # ---- tiling: pad the token axis to a multiple of the (128-aligned) tile ----
    if L <= max_tile:
        tq = tk = _round_up(L, 128)
        L_pad = tq
    else:
        tq = tk = max_tile
        L_pad = _round_up(L, max_tile)
    assert L_pad % tq == 0 and L_pad % tk == 0
    mask_keys = (L_pad != L)

    wq_f, bq_f, wkv_f, bkv_f, wout_f, bout_f = _fuse_params(params, C, num_heads)

    # Channels-first activations; no host-side token-major transpose anywhere.
    x1_cf = x1.reshape(B, C, L).astype(jnp.float32)
    x2_cf = x2.reshape(B, C, L).astype(jnp.float32)

    # K/V projection hoisted out of the flash loop: computed once per batch as a
    # plain XLA GEMM instead of once per query tile inside the kernel.
    kv = jnp.einsum("oc,bcl->bol", wkv_f, x2_cf,
                    precision=_HIGHEST) + bkv_f[None]                # (B, 2C, L)

    if mask_keys:
        pad = L_pad - L
        x1_cf = jnp.pad(x1_cf, ((0, 0), (0, 0), (0, pad)))
        kv = jnp.pad(kv, ((0, 0), (0, 0), (0, pad)))

    # MXU operands in compute_dtype (bf16 on v6e/v7x); biases & stats stay f32.
    x1_cf = x1_cf.astype(compute_dtype)
    kv = kv.astype(compute_dtype)
    wq = wq_f.astype(compute_dtype)
    wout = wout_f.astype(compute_dtype)
    bq = bq_f.astype(jnp.float32)
    bout = bout_f.astype(jnp.float32)

    grid = (B, L_pad // tq, L_pad // tk)

    kernel = functools.partial(attention_kernel, num_heads=num_heads,
                               kv_valid=L, mask_keys=mask_keys)

    itemsize = jnp.dtype(compute_dtype).itemsize
    cost = pl.CostEstimate(
        flops=int(4 * B * C * C * L_pad + 4 * B * C * L_pad * L_pad),
        transcendentals=int(B * num_heads * L_pad * L_pad),
        bytes_accessed=int((x1_cf.size + kv.size) * itemsize
                           + B * C * L_pad * jnp.dtype(out_dtype).itemsize),
    )

    out_flat = pl.pallas_call(
        kernel,
        out_shape=jax.ShapeDtypeStruct((B, C, L_pad), out_dtype),
        grid_spec=pltpu.PrefetchScalarGridSpec(
            num_scalar_prefetch=0,
            grid=grid,
            in_specs=[
                pl.BlockSpec((1, C, tq), lambda b, qi, ki: (b, 0, qi)),      # x1
                pl.BlockSpec((1, 2 * C, tk), lambda b, qi, ki: (b, 0, ki)),  # kv
                pl.BlockSpec((C, C), lambda b, qi, ki: (0, 0)),              # wq
                pl.BlockSpec((C, 1), lambda b, qi, ki: (0, 0)),              # bq
                pl.BlockSpec((C, C), lambda b, qi, ki: (0, 0)),              # wout
                pl.BlockSpec((C, 1), lambda b, qi, ki: (0, 0)),              # bout
            ],
            out_specs=pl.BlockSpec((1, C, tq), lambda b, qi, ki: (b, 0, qi)),
            scratch_shapes=[
                pltpu.VMEM((C, tq), compute_dtype),                  # projected Q
                pltpu.VMEM((C, tq), jnp.float32),                    # acc (heads packed)
                pltpu.VMEM((num_heads, 1, tq), jnp.float32),         # running max
                pltpu.VMEM((num_heads, 1, tq), jnp.float32),         # running denom
            ],
        ),
        compiler_params=pltpu.CompilerParams(
            dimension_semantics=("parallel", "parallel", "arbitrary"),
            # Explicit VMEM budget so larger tq/tk sweeps don't hit the scoped
            # default (32 MiB on v6e/v7x, 16 MiB on v5e); usage here is tiny.
            vmem_limit_bytes=64 * 1024 * 1024,
        ),
        cost_estimate=cost,
    )(x1_cf, kv, wq, bq, wout, bout)

    return out_flat[:, :, :L].reshape(B, C, H, W)


# -----------------------------------------------------------------------------
# Pure-JAX reference (mirrors the unfused PyTorch forward pass)
# -----------------------------------------------------------------------------
def attention_reference(x1, x2, params, num_heads):
    B, C, H, W = x1.shape
    L = H * W
    D = C // num_heads
    x1f = jnp.transpose(x1.reshape(B, C, L), (0, 2, 1))
    x2f = jnp.transpose(x2.reshape(B, C, L), (0, 2, 1))

    def lin(x, w, b):
        return jnp.einsum("blc,oc->blo", x, w, precision=_HIGHEST) + b

    xq = lin(x1f, params["wq_c"], params["bq_c"])
    xk = lin(x2f, params["wk_c"], params["bk_c"])
    xv = lin(x2f, params["wv_c"], params["bv_c"])

    w_in, b_in = params["in_proj_w"], params["in_proj_b"]
    q = lin(xq, w_in[:C], b_in[:C]).reshape(B, L, num_heads, D).transpose(0, 2, 1, 3)
    k = lin(xk, w_in[C:2 * C], b_in[C:2 * C]).reshape(B, L, num_heads, D).transpose(0, 2, 1, 3)
    v = lin(xv, w_in[2 * C:], b_in[2 * C:]).reshape(B, L, num_heads, D).transpose(0, 2, 1, 3)

    s = jnp.einsum("bhqd,bhkd->bhqk", q, k, precision=_HIGHEST) / jnp.sqrt(jnp.float32(D))
    s = s - jnp.max(s, axis=-1, keepdims=True)
    p = jnp.exp(s)
    p = p / jnp.sum(p, axis=-1, keepdims=True)
    attn = jnp.einsum("bhqk,bhkd->bhqd", p, v, precision=_HIGHEST)
    attn = attn.transpose(0, 2, 1, 3).reshape(B, L, C)

    out = lin(attn, params["wo"], params["bo"])
    out = lin(out, params["wout_c"], params["bout_c"])
    return jnp.transpose(out, (0, 2, 1)).reshape(B, C, H, W)


if __name__ == "__main__":
    NUM_HEADS = 2
    key = jax.random.PRNGKey(0)
    k1, k2, kp, k3, k4 = jax.random.split(key, 5)

    # ---- test 1: aligned L=512 -> 256-token tiles, 2x2x2 flash grid, f32 ------
    B, C, H, W = 2, 8, 16, 32
    x1 = jax.random.normal(k1, (B, C, H, W), jnp.float32)
    x2 = jax.random.normal(k2, (B, C, H, W), jnp.float32)
    params = init_params(kp, C)

    out = attention_forward(x1, x2, params, NUM_HEADS,
                            compute_dtype=jnp.float32, max_tile=256)
    out = jax.block_until_ready(out)
    ref = attention_reference(x1, x2, params, NUM_HEADS)
    assert out.shape == (B, C, H, W)
    assert jnp.allclose(out, ref, rtol=5e-3, atol=1e-3), (
        "f32 mismatch, max abs err = "
        f"{float(jnp.max(jnp.abs(out - ref)))}")

    # ---- test 2: bf16 MXU operands (the recommended perf path) ---------------
    out_bf16 = attention_forward(x1, x2, params, NUM_HEADS,
                                 compute_dtype=jnp.bfloat16, max_tile=256)
    out_bf16 = jax.block_until_ready(out_bf16)
    bf16_err = float(jnp.max(jnp.abs(out_bf16 - ref)))
    assert bool(jnp.isfinite(out_bf16).all()) and bf16_err < 0.15, (
        f"bf16 mismatch, max abs err = {bf16_err}")

    # ---- test 3: non-128-aligned L (padded + key-masked path), f32 -----------
    Bs, Hs, Ws = 1, 10, 10          # L = 100 -> padded to 128 with key masking
    x1s = jax.random.normal(k3, (Bs, C, Hs, Ws), jnp.float32)
    x2s = jax.random.normal(k4, (Bs, C, Hs, Ws), jnp.float32)
    out_s = attention_forward(x1s, x2s, params, NUM_HEADS,
                              compute_dtype=jnp.float32)
    out_s = jax.block_until_ready(out_s)
    ref_s = attention_reference(x1s, x2s, params, NUM_HEADS)
    assert jnp.allclose(out_s, ref_s, rtol=5e-3, atol=1e-3), (
        "padded-L mismatch, max abs err = "
        f"{float(jnp.max(jnp.abs(out_s - ref_s)))}")

    print("KERNEL_OK")
</pallas_src>

<mosaic_0001>
module attributes {stable_mosaic.version = 11 : i64} {
  func.func @attention_kernel(%arg0: i32, %arg1: i32, %arg2: i32, %arg3: memref<1x8x256xf32, #tpu.memory_space<vmem>>, %arg4: memref<1x16x256xf32, #tpu.memory_space<vmem>>, %arg5: memref<8x8xf32, #tpu.memory_space<vmem>>, %arg6: memref<8x1xf32, #tpu.memory_space<vmem>>, %arg7: memref<8x8xf32, #tpu.memory_space<vmem>>, %arg8: memref<8x1xf32, #tpu.memory_space<vmem>>, %arg9: memref<1x8x256xf32, #tpu.memory_space<vmem>>, %arg10: memref<8x256xf32, #tpu.memory_space<vmem>>, %arg11: memref<8x256xf32, #tpu.memory_space<vmem>>, %arg12: memref<2x1x256xf32, #tpu.memory_space<vmem>>, %arg13: memref<2x1x256xf32, #tpu.memory_space<vmem>>) attributes {dimension_semantics = [#tpu.dimension_semantics<parallel>, #tpu.dimension_semantics<parallel>, #tpu.dimension_semantics<arbitrary>], iteration_bounds = array<i64: 2, 2, 2>, scalar_prefetch = 0 : i64, scratch_operands = 4 : i64, tpu.core_type = #tpu.core_type<tc>, window_params = [{transform_indices = @transform_0, window_bounds = array<i64: 1, 8, 256>}, {transform_indices = @transform_1, window_bounds = array<i64: 1, 16, 256>}, {pipeline_mode = #tpu.pipeline_mode<synchronous>, transform_indices = @transform_2, window_bounds = array<i64: 8, 8>}, {pipeline_mode = #tpu.pipeline_mode<synchronous>, transform_indices = @transform_3, window_bounds = array<i64: 8, 1>}, {pipeline_mode = #tpu.pipeline_mode<synchronous>, transform_indices = @transform_4, window_bounds = array<i64: 8, 8>}, {pipeline_mode = #tpu.pipeline_mode<synchronous>, transform_indices = @transform_5, window_bounds = array<i64: 8, 1>}, {transform_indices = @transform_6, window_bounds = array<i64: 1, 8, 256>}]} {
    %c0_i32 = arith.constant 0 : i32
    %0 = arith.cmpi eq, %arg2, %c0_i32 : i32
    %1 = arith.extui %0 : i1 to i32
    %c0_i32_0 = arith.constant 0 : i32
    %2 = arith.cmpi ne, %1, %c0_i32_0 : i32
    scf.if %2 {
      %c0_43 = arith.constant 0 : index
      %c0_44 = arith.constant 0 : index
      %73 = vector.load %arg5[%c0_43, %c0_44] : memref<8x8xf32, #tpu.memory_space<vmem>>, vector<8x8xf32>
      %c0_45 = arith.constant 0 : index
      %c0_46 = arith.constant 0 : index
      %c0_47 = arith.constant 0 : index
      %74 = vector.load %arg3[%c0_45, %c0_46, %c0_47] : memref<1x8x256xf32, #tpu.memory_space<vmem>>, vector<1x8x256xf32>
      %75 = vector.shape_cast %74 : vector<1x8x256xf32> to vector<8x256xf32>
      %cst_48 = arith.constant dense<0.000000e+00> : vector<8x256xf32>
      %76 = tpu.matmul %73, %75, %cst_48 {dimension_numbers = #tpu.dot_dimension_numbers<[1], [0], [0], [1], [0, 0, 1, 1], [], []>} : vector<8x8xf32>, vector<8x256xf32>, vector<8x256xf32> -> vector<8x256xf32>
      %c0_49 = arith.constant 0 : index
      %c0_50 = arith.constant 0 : index
      %77 = vector.load %arg6[%c0_49, %c0_50] : memref<8x1xf32, #tpu.memory_space<vmem>>, vector<8x1xf32>
      %78 = vector.broadcast %77 : vector<8x1xf32> to vector<8x256xf32>
      %79 = arith.addf %76, %78 : vector<8x256xf32>
      %c0_51 = arith.constant 0 : index
      %c0_52 = arith.constant 0 : index
      %80 = vector.load %arg10[%c0_51, %c0_52] : memref<8x256xf32, #tpu.memory_space<vmem>>, vector<8x256xf32>
      tpu.vector_store %arg10[%c0_51, %c0_52], %79 {strides = array<i32>} : memref<8x256xf32, #tpu.memory_space<vmem>>, vector<8x256xf32>,
      %cst_53 = arith.constant -1.000000e+30 : f32
      %81 = vector.broadcast %cst_53 : f32 to vector<2x1x256xf32>
      %c0_54 = arith.constant 0 : index
      %c0_55 = arith.constant 0 : index
      %c0_56 = arith.constant 0 : index
      %82 = vector.load %arg12[%c0_54, %c0_55, %c0_56] : memref<2x1x256xf32, #tpu.memory_space<vmem>>, vector<2x1x256xf32>
      tpu.vector_store %arg12[%c0_54, %c0_55, %c0_56], %81 {strides = array<i32>} : memref<2x1x256xf32, #tpu.memory_space<vmem>>, vector<2x1x256xf32>,
      %cst_57 = arith.constant 0.000000e+00 : f32
      %83 = vector.broadcast %cst_57 : f32 to vector<2x1x256xf32>
      %c0_58 = arith.constant 0 : index
      %c0_59 = arith.constant 0 : index
      %c0_60 = arith.constant 0 : index
      %84 = vector.load %arg13[%c0_58, %c0_59, %c0_60] : memref<2x1x256xf32, #tpu.memory_space<vmem>>, vector<2x1x256xf32>
      tpu.vector_store %arg13[%c0_58, %c0_59, %c0_60], %83 {strides = array<i32>} : memref<2x1x256xf32, #tpu.memory_space<vmem>>, vector<2x1x256xf32>,
      %cst_61 = arith.constant 0.000000e+00 : f32
      %85 = vector.broadcast %cst_61 : f32 to vector<8x256xf32>
      %c0_62 = arith.constant 0 : index
      %c0_63 = arith.constant 0 : index
      %86 = vector.load %arg11[%c0_62, %c0_63] : memref<8x256xf32, #tpu.memory_space<vmem>>, vector<8x256xf32>
      tpu.vector_store %arg11[%c0_62, %c0_63], %85 {strides = array<i32>} : memref<8x256xf32, #tpu.memory_space<vmem>>, vector<8x256xf32>,
    } else {
    }
    %c0 = arith.constant 0 : index
    %c0_1 = arith.constant 0 : index
    %c0_2 = arith.constant 0 : index
    %3 = vector.load %arg4[%c0, %c0_1, %c0_2] : memref<1x16x256xf32, #tpu.memory_space<vmem>>, vector<1x16x256xf32>
    %4 = vector.shape_cast %3 : vector<1x16x256xf32> to vector<16x256xf32>
    %c0_3 = arith.constant 0 : index
    %c0_4 = arith.constant 0 : index
    %5 = vector.load %arg10[%c0_3, %c0_4] : memref<8x256xf32, #tpu.memory_space<vmem>>, vector<8x256xf32>
    %6 = vector.extract_strided_slice %5 {offsets = [0, 0], sizes = [4, 256], strides = [1, 1]} : vector<8x256xf32> to vector<4x256xf32>
    %7 = vector.extract_strided_slice %4 {offsets = [0, 0], sizes = [4, 256], strides = [1, 1]} : vector<16x256xf32> to vector<4x256xf32>
    %8 = vector.extract_strided_slice %4 {offsets = [8, 0], sizes = [4, 256], strides = [1, 1]} : vector<16x256xf32> to vector<4x256xf32>
    %cst = arith.constant dense<0.000000e+00> : vector<256x256xf32>
    %9 = tpu.matmul %7, %6, %cst {dimension_numbers = #tpu.dot_dimension_numbers<[0], [0], [1], [1], [0, 1, 1, 1], [], []>} : vector<4x256xf32>, vector<4x256xf32>, vector<256x256xf32> -> vector<256x256xf32>
    %c0_5 = arith.constant 0 : index
    %c0_6 = arith.constant 0 : index
    %c0_7 = arith.constant 0 : index
    %10 = vector.load %arg12[%c0_5, %c0_6, %c0_7] : memref<2x1x256xf32, #tpu.memory_space<vmem>>, vector<1x1x256xf32>
    %11 = vector.shape_cast %10 : vector<1x1x256xf32> to vector<1x256xf32>
    %cst_8 = arith.constant dense<0xFF800000> : vector<256xf32>
    %12 = vector.multi_reduction <maximumf>, %9, %cst_8 [0] : vector<256x256xf32> to vector<256xf32>
    %13 = vector.shape_cast %12 : vector<256xf32> to vector<1x256xf32>
    %14 = arith.maximumf %11, %13 : vector<1x256xf32>
    %15 = arith.subf %11, %14 : vector<1x256xf32>
    %16 = math.exp %15 : vector<1x256xf32>
    %17 = vector.broadcast %14 : vector<1x256xf32> to vector<256x256xf32>
    %18 = arith.subf %9, %17 : vector<256x256xf32>
    %19 = math.exp %18 : vector<256x256xf32>
    %c0_9 = arith.constant 0 : index
    %c0_10 = arith.constant 0 : index
    %c0_11 = arith.constant 0 : index
    %20 = vector.load %arg13[%c0_9, %c0_10, %c0_11] : memref<2x1x256xf32, #tpu.memory_space<vmem>>, vector<1x1x256xf32>
    %21 = vector.shape_cast %20 : vector<1x1x256xf32> to vector<1x256xf32>
    %22 = arith.mulf %16, %21 : vector<1x256xf32>
    %cst_12 = arith.constant dense<0.000000e+00> : vector<256xf32>
    %23 = vector.multi_reduction <add>, %19, %cst_12 [0] : vector<256x256xf32> to vector<256xf32>
    %24 = vector.shape_cast %23 : vector<256xf32> to vector<1x256xf32>
    %25 = arith.addf %22, %24 : vector<1x256xf32>
    %c0_13 = arith.constant 0 : index
    %c0_14 = arith.constant 0 : index
    %c0_15 = arith.constant 0 : index
    %26 = vector.load %arg13[%c0_13, %c0_14, %c0_15] : memref<2x1x256xf32, #tpu.memory_space<vmem>>, vector<1x1x256xf32>
    %27 = vector.shape_cast %26 : vector<1x1x256xf32> to vector<1x256xf32>
    %28 = vector.shape_cast %25 : vector<1x256xf32> to vector<1x1x256xf32>
    tpu.vector_store %arg13[%c0_13, %c0_14, %c0_15], %28 {strides = array<i32>} : memref<2x1x256xf32, #tpu.memory_space<vmem>>, vector<1x1x256xf32>,
    %c0_16 = arith.constant 0 : index
    %c0_17 = arith.constant 0 : index
    %c0_18 = arith.constant 0 : index
    %29 = vector.load %arg12[%c0_16, %c0_17, %c0_18] : memref<2x1x256xf32, #tpu.memory_space<vmem>>, vector<1x1x256xf32>
    %30 = vector.shape_cast %29 : vector<1x1x256xf32> to vector<1x256xf32>
    %31 = vector.shape_cast %14 : vector<1x256xf32> to vector<1x1x256xf32>
    tpu.vector_store %arg12[%c0_16, %c0_17, %c0_18], %31 {strides = array<i32>} : memref<2x1x256xf32, #tpu.memory_space<vmem>>, vector<1x1x256xf32>,
    %cst_19 = arith.constant dense<0.000000e+00> : vector<4x256xf32>
    %32 = tpu.matmul %8, %19, %cst_19 {dimension_numbers = #tpu.dot_dimension_numbers<[1], [0], [0], [1], [0, 0, 1, 1], [], []>} : vector<4x256xf32>, vector<256x256xf32>, vector<4x256xf32> -> vector<4x256xf32>
    %c0_20 = arith.constant 0 : index
    %c0_21 = arith.constant 0 : index
    %33 = vector.load %arg11[%c0_20, %c0_21] : memref<8x256xf32, #tpu.memory_space<vmem>>, vector<4x256xf32>
    %34 = vector.broadcast %16 : vector<1x256xf32> to vector<4x256xf32>
    %35 = arith.mulf %34, %33 : vector<4x256xf32>
    %36 = arith.addf %35, %32 : vector<4x256xf32>
    %c0_22 = arith.constant 0 : index
    %c0_23 = arith.constant 0 : index
    %37 = vector.load %arg11[%c0_22, %c0_23] : memref<8x256xf32, #tpu.memory_space<vmem>>, vector<4x256xf32>
    tpu.vector_store %arg11[%c0_22, %c0_23], %36 {strides = array<i32>} : memref<8x256xf32, #tpu.memory_space<vmem>>, vector<4x256xf32>,
    %38 = vector.extract_strided_slice %5 {offsets = [4, 0], sizes = [4, 256], strides = [1, 1]} : vector<8x256xf32> to vector<4x256xf32>
    %39 = vector.extract_strided_slice %4 {offsets = [4, 0], sizes = [4, 256], strides = [1, 1]} : vector<16x256xf32> to vector<4x256xf32>
    %40 = vector.extract_strided_slice %4 {offsets = [12, 0], sizes = [4, 256], strides = [1, 1]} : vector<16x256xf32> to vector<4x256xf32>
    %cst_24 = arith.constant dense<0.000000e+00> : vector<256x256xf32>
    %41 = tpu.matmul %39, %38, %cst_24 {dimension_numbers = #tpu.dot_dimension_numbers<[0], [0], [1], [1], [0, 1, 1, 1], [], []>} : vector<4x256xf32>, vector<4x256xf32>, vector<256x256xf32> -> vector<256x256xf32>
    %c1 = arith.constant 1 : index
    %c0_25 = arith.constant 0 : index
    %c0_26 = arith.constant 0 : index
    %42 = vector.load %arg12[%c1, %c0_25, %c0_26] : memref<2x1x256xf32, #tpu.memory_space<vmem>>, vector<1x1x256xf32>
    %43 = vector.shape_cast %42 : vector<1x1x256xf32> to vector<1x256xf32>
    %cst_27 = arith.constant dense<0xFF800000> : vector<256xf32>
    %44 = vector.multi_reduction <maximumf>, %41, %cst_27 [0] : vector<256x256xf32> to vector<256xf32>
    %45 = vector.shape_cast %44 : vector<256xf32> to vector<1x256xf32>
    %46 = arith.maximumf %43, %45 : vector<1x256xf32>
    %47 = arith.subf %43, %46 : vector<1x256xf32>
    %48 = math.exp %47 : vector<1x256xf32>
    %49 = vector.broadcast %46 : vector<1x256xf32> to vector<256x256xf32>
    %50 = arith.subf %41, %49 : vector<256x256xf32>
    %51 = math.exp %50 : vector<256x256xf32>
    %c1_28 = arith.constant 1 : index
    %c0_29 = arith.constant 0 : index
    %c0_30 = arith.constant 0 : index
    %52 = vector.load %arg13[%c1_28, %c0_29, %c0_30] : memref<2x1x256xf32, #tpu.memory_space<vmem>>, vector<1x1x256xf32>
    %53 = vector.shape_cast %52 : vector<1x1x256xf32> to vector<1x256xf32>
    %54 = arith.mulf %48, %53 : vector<1x256xf32>
    %cst_31 = arith.constant dense<0.000000e+00> : vector<256xf32>
    %55 = vector.multi_reduction <add>, %51, %cst_31 [0] : vector<256x256xf32> to vector<256xf32>
    %56 = vector.shape_cast %55 : vector<256xf32> to vector<1x256xf32>
    %57 = arith.addf %54, %56 : vector<1x256xf32>
    %c1_32 = arith.constant 1 : index
    %c0_33 = arith.constant 0 : index
    %c0_34 = arith.constant 0 : index
    %58 = vector.load %arg13[%c1_32, %c0_33, %c0_34] : memref<2x1x256xf32, #tpu.memory_space<vmem>>, vector<1x1x256xf32>
    %59 = vector.shape_cast %58 : vector<1x1x256xf32> to vector<1x256xf32>
    %60 = vector.shape_cast %57 : vector<1x256xf32> to vector<1x1x256xf32>
    tpu.vector_store %arg13[%c1_32, %c0_33, %c0_34], %60 {strides = array<i32>} : memref<2x1x256xf32, #tpu.memory_space<vmem>>, vector<1x1x256xf32>,
    %c1_35 = arith.constant 1 : index
    %c0_36 = arith.constant 0 : index
    %c0_37 = arith.constant 0 : index
    %61 = vector.load %arg12[%c1_35, %c0_36, %c0_37] : memref<2x1x256xf32, #tpu.memory_space<vmem>>, vector<1x1x256xf32>
    %62 = vector.shape_cast %61 : vector<1x1x256xf32> to vector<1x256xf32>
    %63 = vector.shape_cast %46 : vector<1x256xf32> to vector<1x1x256xf32>
    tpu.vector_store %arg12[%c1_35, %c0_36, %c0_37], %63 {strides = array<i32>} : memref<2x1x256xf32, #tpu.memory_space<vmem>>, vector<1x1x256xf32>,
    %cst_38 = arith.constant dense<0.000000e+00> : vector<4x256xf32>
    %64 = tpu.matmul %40, %51, %cst_38 {dimension_numbers = #tpu.dot_dimension_numbers<[1], [0], [0], [1], [0, 0, 1, 1], [], []>} : vector<4x256xf32>, vector<256x256xf32>, vector<4x256xf32> -> vector<4x256xf32>
    %c4 = arith.constant 4 : index
    %c0_39 = arith.constant 0 : index
    %65 = vector.load %arg11[%c4, %c0_39] : memref<8x256xf32, #tpu.memory_space<vmem>>, vector<4x256xf32>
    %66 = vector.broadcast %48 : vector<1x256xf32> to vector<4x256xf32>
    %67 = arith.mulf %66, %65 : vector<4x256xf32>
    %68 = arith.addf %67, %64 : vector<4x256xf32>
    %c4_40 = arith.constant 4 : index
    %c0_41 = arith.constant 0 : index
    %69 = vector.load %arg11[%c4_40, %c0_41] : memref<8x256xf32, #tpu.memory_space<vmem>>, vector<4x256xf32>
    tpu.vector_store %arg11[%c4_40, %c0_41], %68 {strides = array<i32>} : memref<8x256xf32, #tpu.memory_space<vmem>>, vector<4x256xf32>,
    %c1_i32 = arith.constant 1 : i32
    %70 = arith.cmpi eq, %arg2, %c1_i32 : i32
    %71 = arith.extui %70 : i1 to i32
    %c0_i32_42 = arith.constant 0 : i32
    %72 = arith.cmpi ne, %71, %c0_i32_42 : i32
    scf.if %72 {
      %c0_43 = arith.constant 0 : index
      %c0_44 = arith.constant 0 : index
      %73 = vector.load %arg11[%c0_43, %c0_44] : memref<8x256xf32, #tpu.memory_space<vmem>>, vector<4x256xf32>
      %c0_45 = arith.constant 0 : index
      %c0_46 = arith.constant 0 : index
      %c0_47 = arith.constant 0 : index
      %74 = vector.load %arg13[%c0_45, %c0_46, %c0_47] : memref<2x1x256xf32, #tpu.memory_space<vmem>>, vector<1x1x256xf32>
      %75 = vector.shape_cast %74 : vector<1x1x256xf32> to vector<1x256xf32>
      %cst_48 = arith.constant 1.000000e+00 : f32
      %76 = vector.broadcast %cst_48 : f32 to vector<1x256xf32>
      %77 = arith.divf %76, %75 : vector<1x256xf32>
      %78 = vector.broadcast %77 : vector<1x256xf32> to vector<4x256xf32>
      %79 = arith.mulf %73, %78 : vector<4x256xf32>
      %c4_49 = arith.constant 4 : index
      %c0_50 = arith.constant 0 : index
      %80 = vector.load %arg11[%c4_49, %c0_50] : memref<8x256xf32, #tpu.memory_space<vmem>>, vector<4x256xf32>
      %c1_51 = arith.constant 1 : index
      %c0_52 = arith.constant 0 : index
      %c0_53 = arith.constant 0 : index
      %81 = vector.load %arg13[%c1_51, %c0_52, %c0_53] : memref<2x1x256xf32, #tpu.memory_space<vmem>>, vector<1x1x256xf32>
      %82 = vector.shape_cast %81 : vector<1x1x256xf32> to vector<1x256xf32>
      %cst_54 = arith.constant 1.000000e+00 : f32
      %83 = vector.broadcast %cst_54 : f32 to vector<1x256xf32>
      %84 = arith.divf %83, %82 : vector<1x256xf32>
      %85 = vector.broadcast %84 : vector<1x256xf32> to vector<4x256xf32>
      %86 = arith.mulf %80, %85 : vector<4x256xf32>
      %87 = tpu.concatenate %79, %86 in 0 : vector<4x256xf32>, vector<4x256xf32> -> vector<8x256xf32>
      %c0_55 = arith.constant 0 : index
      %c0_56 = arith.constant 0 : index
      %88 = vector.load %arg7[%c0_55, %c0_56] : memref<8x8xf32, #tpu.memory_space<vmem>>, vector<8x8xf32>
      %cst_57 = arith.constant dense<0.000000e+00> : vector<8x256xf32>
      %89 = tpu.matmul %88, %87, %cst_57 {dimension_numbers = #tpu.dot_dimension_numbers<[1], [0], [0], [1], [0, 0, 1, 1], [], []>} : vector<8x8xf32>, vector<8x256xf32>, vector<8x256xf32> -> vector<8x256xf32>
      %c0_58 = arith.constant 0 : index
      %c0_59 = arith.constant 0 : index
      %90 = vector.load %arg8[%c0_58, %c0_59] : memref<8x1xf32, #tpu.memory_space<vmem>>, vector<8x1xf32>
      %91 = vector.broadcast %90 : vector<8x1xf32> to vector<8x256xf32>
      %92 = arith.addf %89, %91 : vector<8x256xf32>
      %c0_60 = arith.constant 0 : index
      %c0_61 = arith.constant 0 : index
      %c0_62 = arith.constant 0 : index
      %93 = vector.load %arg9[%c0_60, %c0_61, %c0_62] : memref<1x8x256xf32, #tpu.memory_space<vmem>>, vector<1x8x256xf32>
      %94 = vector.shape_cast %93 : vector<1x8x256xf32> to vector<8x256xf32>
      %95 = vector.shape_cast %92 : vector<8x256xf32> to vector<1x8x256xf32>
      tpu.vector_store %arg9[%c0_60, %c0_61, %c0_62], %95 {strides = array<i32>} : memref<1x8x256xf32, #tpu.memory_space<vmem>>, vector<1x8x256xf32>,
    } else {
    }
    return
  }
  func.func @transform_0(%arg0: i32, %arg1: i32, %arg2: i32) -> (i32, i32, i32) {
    %c0_i32 = arith.constant 0 : i32
    %c0_i32_0 = arith.constant 0 : i32
    return %arg0, %c0_i32, %arg1 : i32, i32, i32
  }
  func.func @transform_1(%arg0: i32, %arg1: i32, %arg2: i32) -> (i32, i32, i32) {
    %c0_i32 = arith.constant 0 : i32
    %c0_i32_0 = arith.constant 0 : i32
    return %arg0, %c0_i32, %arg2 : i32, i32, i32
  }
  func.func @transform_2(%arg0: i32, %arg1: i32, %arg2: i32) -> (i32, i32) {
    %c0_i32 = arith.constant 0 : i32
    %c0_i32_0 = arith.constant 0 : i32
    %c0_i32_1 = arith.constant 0 : i32
    return %c0_i32, %c0_i32_0 : i32, i32
  }
  func.func @transform_3(%arg0: i32, %arg1: i32, %arg2: i32) -> (i32, i32) {
    %c0_i32 = arith.constant 0 : i32
    %c0_i32_0 = arith.constant 0 : i32
    %c0_i32_1 = arith.constant 0 : i32
    return %c0_i32, %c0_i32_0 : i32, i32
  }
  func.func @transform_4(%arg0: i32, %arg1: i32, %arg2: i32) -> (i32, i32) {
    %c0_i32 = arith.constant 0 : i32
    %c0_i32_0 = arith.constant 0 : i32
    %c0_i32_1 = arith.constant 0 : i32
    return %c0_i32, %c0_i32_0 : i32, i32
  }
  func.func @transform_5(%arg0: i32, %arg1: i32, %arg2: i32) -> (i32, i32) {
    %c0_i32 = arith.constant 0 : i32
    %c0_i32_0 = arith.constant 0 : i32
    %c0_i32_1 = arith.constant 0 : i32
    return %c0_i32, %c0_i32_0 : i32, i32
  }
  func.func @transform_6(%arg0: i32, %arg1: i32, %arg2: i32) -> (i32, i32, i32) {
    %c0_i32 = arith.constant 0 : i32
    %c0_i32_0 = arith.constant 0 : i32
    return %arg0, %c0_i32, %arg1 : i32, i32, i32
  }
}

</mosaic_0001>

<llo_original>
// kernel: tpu_custom_call.1
$region0: #{tpu_custom_call.1}
  #allocation0 [shape = 'u32[]', space=smem, size = 0x4, offset = 0x4, fixed_abs, tag = 'smem constant byte address 0x4 - core index']
  #allocation1 [shape = 'u32[144,128]{1,0:T(1,128)}', space=vmem, size = 0x12000, scoped, tag = 'internal scratch']
  #allocation2 [shape = 'f32[8,256]{1,0:T(8,128)}', space=vmem, size = 0x2000, scoped, tag = 'scratch operand']
  #allocation3 [shape = 'f32[8,256]{1,0:T(8,128)}', space=vmem, size = 0x2000, scoped, tag = 'scratch operand']
  #allocation4 [shape = 'f32[2,1,256]{2,1,0:T(1,128)}', space=vmem, size = 0x800, scoped, tag = 'scratch operand']
  #allocation5 [shape = 'f32[2,1,256]{2,1,0:T(1,128)}', space=vmem, size = 0x800, scoped, tag = 'scratch operand']
  %s0 = inlined_call_operand.hbm [shape: f32[2,8,512], index: 0, kind: input, shape index: {}]
  %s1 = inlined_call_operand.hbm [shape: f32[2,16,512], index: 1, kind: input, shape index: {}]
  %s2 = inlined_call_operand.hbm [shape: f32[8,8], index: 2, kind: input, shape index: {}]
  %s3 = inlined_call_operand.hbm [shape: f32[8,1], index: 3, kind: input, shape index: {}]
  %s4 = inlined_call_operand.hbm [shape: f32[8,8], index: 4, kind: input, shape index: {}]
  %s5 = inlined_call_operand.hbm [shape: f32[8,1], index: 5, kind: input, shape index: {}]
  %s6 = inlined_call_operand.hbm [shape: f32[2,8,512], index: 6, kind: output, shape index: {}]
  %s7 = sld [smem:[#allocation0]]
  $region89: #{tpu_custom_call.1} parent=0
    _
  %s9 = ssub.s32 1, %s7
  %s10 = scalar_select 0, %s9, %s7
  $region1: #{tpu_custom_call.1} parent=0
    #allocation6 [shape = 'u8[16384]{0}', space=vmem, size = 0x4000, scoped, tag = 'input window, operand 0']
    #allocation7 [shape = 's32[2]{0}', space=sflag, size = 0x8, scoped, tag = 'scoped memory for tpu_custom_call.1']
    #allocation8 [shape = 's32[2]{0}', space=sflag, size = 0x8, scoped, tag = 'scoped memory for tpu_custom_call.1']
    #allocation9 [shape = 'u8[32768]{0}', space=vmem, size = 0x8000, scoped, tag = 'input window, operand 1']
    #allocation10 [shape = 's32[2]{0}', space=sflag, size = 0x8, scoped, tag = 'scoped memory for tpu_custom_call.1']
    #allocation11 [shape = 'u8[4096]{0}', space=vmem, size = 0x1000, scoped, tag = 'input window, operand 2, single buffered']
    #allocation12 [shape = 'u8[4096]{0}', space=vmem, size = 0x1000, scoped, tag = 'input window, operand 3, single buffered']
    #allocation13 [shape = 's32[1]{0}', space=sflag, size = 0x4, scoped, tag = 'scoped memory for tpu_custom_call.1']
    #allocation14 [shape = 'u8[4096]{0}', space=vmem, size = 0x1000, scoped, tag = 'input window, operand 4, single buffered']
    #allocation15 [shape = 'u8[4096]{0}', space=vmem, size = 0x1000, scoped, tag = 'input window, operand 5, single buffered']
    #allocation16 [shape = 's32[1]{0}', space=sflag, size = 0x4, scoped, tag = 'scoped memory for tpu_custom_call.1']
    #allocation17 [shape = 'u8[16384]{0}', space=vmem, size = 0x4000, scoped, tag = 'output window, operand 0']
    %11 = vsyncpa [#allocation7], 0
    %s12 = scalar_lea.sflag [#allocation7], 1
    %13 = vsyncpa %s12, 0
    %14 = vsyncpa [#allocation10], 0
    %s15 = scalar_lea.sflag [#allocation10], 1
    %16 = vsyncpa %s15, 0
    %17 = vsyncpa [#allocation13], 0
    %18 = vsyncpa [#allocation16], 0
    %19 = vsyncpa [#allocation8], 0
    %s20 = scalar_lea.sflag [#allocation8], 1
    %21 = vsyncpa %s20, 0
    loop: start=0, step=1, limit=10
    $region2: #{tpu_custom_call.1} parent=1 // loop_pre_header
      _
    $region3: #{tpu_custom_call.1} parent=1 // loop_header
      %s23 = sphi 0, %s27
      %p24 = scmp.ge.s32.totalorder %s23, 10
      %s30 = sphi 0, %s49
      %s31 = sphi 0, %s45
      %s32 = sphi 0, %s41
      %s33 = sphi 0, %s30
      %s34 = sphi 0, %s31
      %s35 = sphi 0, %s32
      %s36 = sphi 0, %s33
      %s37 = sphi 0, %s34
      %s38 = sphi 0, %s35
      %s54 = sphi 0, %s56
      %s57 = sphi 0, %s54
      %s58 = sphi 0, %s57
      %s74 = sphi 0, %s58
      %s82 = sphi 0, %s84
      %s85 = sphi 0, %s82
      %s86 = sphi 0, %s85
      %s102 = sphi 0, %s86
      %s106 = sphi 0, %s106
      %s108 = sphi 0, %s106
      %s109 = sphi 0, %s108
      %s123 = sphi 0, %s109
      %s127 = sphi 0, %s127
      %s129 = sphi 0, %s127
      %s130 = sphi 0, %s129
      %s144 = sphi 0, %s130
      %s148 = sphi 0, %s148
      %s150 = sphi 0, %s148
      %s151 = sphi 0, %s150
      %s165 = sphi 0, %s151
      %s169 = sphi 0, %s169
      %s171 = sphi 0, %s169
      %s172 = sphi 0, %s171
      %s186 = sphi 0, %s172
      %s194 = sphi 0, %s196
      %s197 = sphi 0, %s194
      %s198 = sphi 0, %s197
      %s214 = sphi 0, %s198
    $region4: #{tpu_custom_call.1} parent=1 // loop_header_branch
      %26 = sbr.rel (%p24) target = $region8
    $region5: #{tpu_custom_call.1} parent=1 // loop_body
      %s28 = ssub.s32 %s23, 1
      %s29 = ssub.s32 %s23, 2
      %s39 = sadd.s32 1, %s32
      %p40 = scmp.ge.s32.totalorder %s39, 2
      %s41 = scalar_select %p40, 0, %s39
      %s42 = sadd.s32 1, %s31
      %s43 = scalar_select %p40, %s42, %s31
      %p44 = scmp.ge.s32.totalorder %s43, 2
      %s45 = scalar_select %p44, 0, %s43
      %s46 = sadd.s32 1, %s30
      %s47 = scalar_select %p44, %s46, %s30
      %p48 = scmp.ge.s32.totalorder %s47, 2
      %s49 = scalar_select %p48, 0, %s47
      %s50 = ssub.s32 %s30, %s49
      %s51 = ssub.s32 %s31, %s45
      %s52 = sor.u32 %s50, %s51
      %p53 = scmp.eq.s32.totalorder %s52, 0
      %s55 = sadd.s32 %s54, 1
      %s56 = scalar_select %p53, %s54, %s55
      %p59 = pneg %p53
      %p60 = scmp.eq.s32.totalorder %s23, 7
      %p61 = por %p59, %p60
      %p62 = scmp.ne.s32.totalorder %s54, %s57
      %p63 = scmp.eq.s32.totalorder %s23, 0
      %p64 = por %p62, %p63
      %p65 = scmp.ne.s32.totalorder %s54, %s57
      %p66 = scmp.eq.s32.totalorder %s28, 7
      %p67 = por %p65, %p66
      %p68 = scmp.ne.s32.totalorder %s57, %s58
      %p69 = scmp.eq.s32.totalorder %s28, 0
      %p70 = por %p68, %p69
      %p71 = scmp.ne.s32.totalorder %s57, %s58
      %p72 = scmp.eq.s32.totalorder %s29, 7
      %p73 = por %p71, %p72
      %p75 = scmp.ne.s32.totalorder %s58, %s74
      %p76 = scmp.eq.s32.totalorder %s29, 0
      %p77 = por %p75, %p76
      %s78 = ssub.s32 %s30, %s49
      %s79 = ssub.s32 %s32, %s41
      %s80 = sor.u32 %s78, %s79
      %p81 = scmp.eq.s32.totalorder %s80, 0
      %s83 = sadd.s32 %s82, 1
      %s84 = scalar_select %p81, %s82, %s83
      %p87 = pneg %p81
      %p88 = scmp.eq.s32.totalorder %s23, 7
      %p89 = por %p87, %p88
      %p90 = scmp.ne.s32.totalorder %s82, %s85
      %p91 = scmp.eq.s32.totalorder %s23, 0
      %p92 = por %p90, %p91
      %p93 = scmp.ne.s32.totalorder %s82, %s85
      %p94 = scmp.eq.s32.totalorder %s28, 7
      %p95 = por %p93, %p94
      %p96 = scmp.ne.s32.totalorder %s85, %s86
      %p97 = scmp.eq.s32.totalorder %s28, 0
      %p98 = por %p96, %p97
      %p99 = scmp.ne.s32.totalorder %s85, %s86
      %p100 = scmp.eq.s32.totalorder %s29, 7
      %p101 = por %p99, %p100
      %p103 = scmp.ne.s32.totalorder %s86, %s102
      %p104 = scmp.eq.s32.totalorder %s29, 0
      %p105 = por %p103, %p104
      %s107 = sadd.s32 %s106, 1
      %p110 = scmp.eq.s32.totalorder %s23, 7
      %p111 = scmp.ne.s32.totalorder %s106, %s108
      %p112 = scmp.eq.s32.totalorder %s23, 0
      %p113 = por %p111, %p112
      %p114 = scmp.ne.s32.totalorder %s106, %s108
      %p115 = scmp.eq.s32.totalorder %s28, 7
      %p116 = por %p114, %p115
      %p117 = scmp.ne.s32.totalorder %s108, %s109
      %p118 = scmp.eq.s32.totalorder %s28, 0
      %p119 = por %p117, %p118
      %p120 = scmp.ne.s32.totalorder %s108, %s109
      %p121 = scmp.eq.s32.totalorder %s29, 7
      %p122 = por %p120, %p121
      %p124 = scmp.ne.s32.totalorder %s109, %s123
      %p125 = scmp.eq.s32.totalorder %s29, 0
      %p126 = por %p124, %p125
      %s128 = sadd.s32 %s127, 1
      %p131 = scmp.eq.s32.totalorder %s23, 7
      %p132 = scmp.ne.s32.totalorder %s127, %s129
      %p133 = scmp.eq.s32.totalorder %s23, 0
      %p134 = por %p132, %p133
      %p135 = scmp.ne.s32.totalorder %s127, %s129
      %p136 = scmp.eq.s32.totalorder %s28, 7
      %p137 = por %p135, %p136
      %p138 = scmp.ne.s32.totalorder %s129, %s130
      %p139 = scmp.eq.s32.totalorder %s28, 0
      %p140 = por %p138, %p139
      %p141 = scmp.ne.s32.totalorder %s129, %s130
      %p142 = scmp.eq.s32.totalorder %s29, 7
      %p143 = por %p141, %p142
      %p145 = scmp.ne.s32.totalorder %s130, %s144
      %p146 = scmp.eq.s32.totalorder %s29, 0
      %p147 = por %p145, %p146
      %s149 = sadd.s32 %s148, 1
      %p152 = scmp.eq.s32.totalorder %s23, 7
      %p153 = scmp.ne.s32.totalorder %s148, %s150
      %p154 = scmp.eq.s32.totalorder %s23, 0
      %p155 = por %p153, %p154
      %p156 = scmp.ne.s32.totalorder %s148, %s150
      %p157 = scmp.eq.s32.totalorder %s28, 7
      %p158 = por %p156, %p157
      %p159 = scmp.ne.s32.totalorder %s150, %s151
      %p160 = scmp.eq.s32.totalorder %s28, 0
      %p161 = por %p159, %p160
      %p162 = scmp.ne.s32.totalorder %s150, %s151
      %p163 = scmp.eq.s32.totalorder %s29, 7
      %p164 = por %p162, %p163
      %p166 = scmp.ne.s32.totalorder %s151, %s165
      %p167 = scmp.eq.s32.totalorder %s29, 0
      %p168 = por %p166, %p167
      %s170 = sadd.s32 %s169, 1
      %p173 = scmp.eq.s32.totalorder %s23, 7
      %p174 = scmp.ne.s32.totalorder %s169, %s171
      %p175 = scmp.eq.s32.totalorder %s23, 0
      %p176 = por %p174, %p175
      %p177 = scmp.ne.s32.totalorder %s169, %s171
      %p178 = scmp.eq.s32.totalorder %s28, 7
      %p179 = por %p177, %p178
      %p180 = scmp.ne.s32.totalorder %s171, %s172
      %p181 = scmp.eq.s32.totalorder %s28, 0
      %p182 = por %p180, %p181
      %p183 = scmp.ne.s32.totalorder %s171, %s172
      %p184 = scmp.eq.s32.totalorder %s29, 7
      %p185 = por %p183, %p184
      %p187 = scmp.ne.s32.totalorder %s172, %s186
      %p188 = scmp.eq.s32.totalorder %s29, 0
      %p189 = por %p187, %p188
      %s190 = ssub.s32 %s30, %s49
      %s191 = ssub.s32 %s31, %s45
      %s192 = sor.u32 %s190, %s191
      %p193 = scmp.eq.s32.totalorder %s192, 0
      %s195 = sadd.s32 %s194, 1
      %s196 = scalar_select %p193, %s194, %s195
      %p199 = pneg %p193
      %p200 = scmp.eq.s32.totalorder %s23, 7
      %p201 = por %p199, %p200
      %p202 = scmp.ne.s32.totalorder %s194, %s197
      %p203 = scmp.eq.s32.totalorder %s23, 0
      %p204 = por %p202, %p203
      %p205 = scmp.ne.s32.totalorder %s194, %s197
      %p206 = scmp.eq.s32.totalorder %s28, 7
      %p207 = por %p205, %p206
      %p208 = scmp.ne.s32.totalorder %s197, %s198
      %p209 = scmp.eq.s32.totalorder %s28, 0
      %p210 = por %p208, %p209
      %p211 = scmp.ne.s32.totalorder %s197, %s198
      %p212 = scmp.eq.s32.totalorder %s29, 7
      %p213 = por %p211, %p212
      %p215 = scmp.ne.s32.totalorder %s198, %s214
      %p216 = scmp.eq.s32.totalorder %s29, 0
      %p217 = por %p215, %p216
      %p218 = scmp.le.s32.totalorder 1, %s23
      %p219 = scmp.lt.s32.totalorder %s23, 9
      %p220 = pnand %p218, %p219
      %p221 = pneg %p220
      // Predicated region
      $region9: #{tpu_custom_call.1} parent=5 // pred_check
        _
      $region10: #{tpu_custom_call.1} parent=5 // pred_check_branch
        %223 = sbr.rel (%p220) target = $region12
      $region11: #{tpu_custom_call.1} parent=5 // pred_region
        %s224 = ssub.s32 %s23, 1
        // Predicated region
        $region13: #{tpu_custom_call.1} parent=11 // pred_check
          %p225 = pneg %p119
        $region14: #{tpu_custom_call.1} parent=11 // pred_check_branch
          %227 = sbr.rel (%p225) target = $region16
        $region15: #{tpu_custom_call.1} parent=11 // pred_region
          %s229 = ssub.s32 128, 128
          %230 = vsyncadd [#allocation10], %s229
          %s232 = sshll.u32 [#allocation11], 4
          %s233 = int_to_ptr.vmem [resolvable:$true] %s232
          %235 = dma.hbm_to_vmem [thread:$0]  %s2, 128, %s233, [#allocation10]
        $region16: #{tpu_custom_call.1} parent=11 // pred_fallthru
          _
        // Predicated region
        $region17: #{tpu_custom_call.1} parent=11 // pred_check
          %p236 = pneg %p140
        $region18: #{tpu_custom_call.1} parent=11 // pred_check_branch
          %238 = sbr.rel (%p236) target = $region20
        $region19: #{tpu_custom_call.1} parent=11 // pred_region
          %s240 = ssub.s32 128, 128
          %241 = vsyncadd [#allocation13], %s240
          %s243 = sshll.u32 [#allocation12], 4
          %s244 = int_to_ptr.vmem [resolvable:$true] %s243
          %246 = dma.hbm_to_vmem [thread:$0]  %s3, 128, %s244, [#allocation13]
        $region20: #{tpu_custom_call.1} parent=11 // pred_fallthru
          _
        // Predicated region
        $region21: #{tpu_custom_call.1} parent=11 // pred_check
          %p247 = pneg %p161
        $region22: #{tpu_custom_call.1} parent=11 // pred_check_branch
          %249 = sbr.rel (%p247) target = $region24
        $region23: #{tpu_custom_call.1} parent=11 // pred_region
          %s251 = ssub.s32 128, 128
          %252 = vsyncadd [#allocation13], %s251
          %s254 = sshll.u32 [#allocation14], 4
          %s255 = int_to_ptr.vmem [resolvable:$true] %s254
          %257 = dma.hbm_to_vmem [thread:$0]  %s4, 128, %s255, [#allocation13]
        $region24: #{tpu_custom_call.1} parent=11 // pred_fallthru
          _
        // Predicated region
        $region25: #{tpu_custom_call.1} parent=11 // pred_check
          %p258 = pneg %p182
        $region26: #{tpu_custom_call.1} parent=11 // pred_check_branch
          %260 = sbr.rel (%p258) target = $region28
        $region27: #{tpu_custom_call.1} parent=11 // pred_region
          %s262 = ssub.s32 128, 128
          %263 = vsyncadd [#allocation16], %s262
          %s265 = sshll.u32 [#allocation15], 4
          %s266 = int_to_ptr.vmem [resolvable:$true] %s265
          %268 = dma.hbm_to_vmem [thread:$0]  %s5, 128, %s266, [#allocation16]
        $region28: #{tpu_custom_call.1} parent=11 // pred_fallthru
          _
      $region12: #{tpu_custom_call.1} parent=5 // pred_fallthru
        _
      %p269 = scmp.lt.s32.totalorder %s23, 8
      // Predicated region
      $region29: #{tpu_custom_call.1} parent=5 // pred_check
        %p270 = pneg %p269
      $region30: #{tpu_custom_call.1} parent=5 // pred_check_branch
        %272 = sbr.rel (%p270) target = $region32
      $region31: #{tpu_custom_call.1} parent=5 // pred_region
        // Predicated region
        $region33: #{tpu_custom_call.1} parent=31 // pred_check
          %p273 = pneg %p64
        $region34: #{tpu_custom_call.1} parent=31 // pred_check_branch
          %275 = sbr.rel (%p273) target = $region36
        $region35: #{tpu_custom_call.1} parent=31 // pred_region
          %s276 = sand.u32 %s54, 1
          %s277 = scalar_lea.sflag [#allocation7], %s276
          %s278 = sand.u32 %s54, 1
          %s279 = smul.addr %s278, 16
          %s280 = scalar_lea.vmem [#allocation6], %s279
          %s281 = smul.u32 2, %s31
          %s283 = ssub.s32 256, 256
          %284 = vsyncadd %s277, %s283
          %s285 = smul.addr %s30, 4
          %s286 = sadd.s32 %s281, %s285
          %s287 = smul.addr %s286, 128
          %s288 = scalar_lea.hbm %s0, %s287
          %s290 = sshll.u32 %s280, 4
          %s291 = int_to_ptr.vmem [resolvable:$true] %s290
          %293 = dma.hbm_to_vmem [thread:$0]  %s288, 256, %s291, %s277
        $region36: #{tpu_custom_call.1} parent=31 // pred_fallthru
          _
        // Predicated region
        $region37: #{tpu_custom_call.1} parent=31 // pred_check
          %p294 = pneg %p92
        $region38: #{tpu_custom_call.1} parent=31 // pred_check_branch
          %296 = sbr.rel (%p294) target = $region40
        $region39: #{tpu_custom_call.1} parent=31 // pred_region
          %s297 = sand.u32 %s23, 1
          %s298 = scalar_lea.sflag [#allocation10], %s297
          %s299 = sand.u32 %s82, 1
          %s300 = smul.addr %s299, 32
          %s301 = scalar_lea.vmem [#allocation9], %s300
          %s302 = smul.u32 2, %s32
          %s304 = ssub.s32 512, 512
          %305 = vsyncadd %s298, %s304
          %s306 = smul.addr %s30, 8
          %s307 = sadd.s32 %s302, %s306
          %s308 = smul.addr %s307, 128
          %s309 = scalar_lea.hbm %s1, %s308
          %s310 = sshll.u32 %s301, 4
          %s311 = int_to_ptr.vmem [resolvable:$true] %s310
          %316 = dma.hbm_to_vmem [thread:$0]  %s309, 512, %s311, %s298, 512, 256, 16
        $region40: #{tpu_custom_call.1} parent=31 // pred_fallthru
          _
      $region32: #{tpu_custom_call.1} parent=5 // pred_fallthru
        _
      %p317 = scmp.le.s32.totalorder 1, %s23
      %p318 = scmp.lt.s32.totalorder %s23, 9
      %p319 = pnand %p317, %p318
      %p320 = pneg %p319
      // Predicated region
      $region41: #{tpu_custom_call.1} parent=5 // pred_check
        _
      $region42: #{tpu_custom_call.1} parent=5 // pred_check_branch
        %322 = sbr.rel (%p319) target = $region44
      $region43: #{tpu_custom_call.1} parent=5 // pred_region
        %s323 = ssub.s32 %s23, 1
        %s324 = sand.u32 %s57, 1
        %s325 = scalar_lea.sflag [#allocation7], %s324
        %s326 = sand.u32 %s57, 1
        %s327 = smul.addr %s326, 16
        %s328 = scalar_lea.vmem [#allocation6], %s327
        // Predicated region
        $region45: #{tpu_custom_call.1} parent=43 // pred_check
          %p329 = pneg %p70
        $region46: #{tpu_custom_call.1} parent=43 // pred_check_branch
          %331 = sbr.rel (%p329) target = $region48
        $region47: #{tpu_custom_call.1} parent=43 // pred_region
          %332 = dma.done %s325, 256
        $region48: #{tpu_custom_call.1} parent=43 // pred_fallthru
          _
        %s333 = sand.u32 %s28, 1
        %s334 = scalar_lea.sflag [#allocation10], %s333
        %s335 = sand.u32 %s85, 1
        %s336 = smul.addr %s335, 32
        %s337 = scalar_lea.vmem [#allocation9], %s336
        // Predicated region
        $region49: #{tpu_custom_call.1} parent=43 // pred_check
          %p338 = pneg %p98
        $region50: #{tpu_custom_call.1} parent=43 // pred_check_branch
          %340 = sbr.rel (%p338) target = $region52
        $region51: #{tpu_custom_call.1} parent=43 // pred_region
          %341 = dma.done %s334, 512
        $region52: #{tpu_custom_call.1} parent=43 // pred_fallthru
          _
        // Predicated region
        $region53: #{tpu_custom_call.1} parent=43 // pred_check
          %p342 = pneg %p119
        $region54: #{tpu_custom_call.1} parent=43 // pred_check_branch
          %344 = sbr.rel (%p342) target = $region56
        $region55: #{tpu_custom_call.1} parent=43 // pred_region
          %345 = dma.done [#allocation10], 128
        $region56: #{tpu_custom_call.1} parent=43 // pred_fallthru
          _
        // Predicated region
        $region57: #{tpu_custom_call.1} parent=43 // pred_check
          %p346 = pneg %p140
        $region58: #{tpu_custom_call.1} parent=43 // pred_check_branch
          %348 = sbr.rel (%p346) target = $region60
        $region59: #{tpu_custom_call.1} parent=43 // pred_region
          %349 = dma.done [#allocation13], 128
        $region60: #{tpu_custom_call.1} parent=43 // pred_fallthru
          _
        // Predicated region
        $region61: #{tpu_custom_call.1} parent=43 // pred_check
          %p350 = pneg %p161
        $region62: #{tpu_custom_call.1} parent=43 // pred_check_branch
          %352 = sbr.rel (%p350) target = $region64
        $region63: #{tpu_custom_call.1} parent=43 // pred_region
          %353 = dma.done [#allocation13], 128
        $region64: #{tpu_custom_call.1} parent=43 // pred_fallthru
          _
        // Predicated region
        $region65: #{tpu_custom_call.1} parent=43 // pred_check
          %p354 = pneg %p182
        $region66: #{tpu_custom_call.1} parent=43 // pred_check_branch
          %356 = sbr.rel (%p354) target = $region68
        $region67: #{tpu_custom_call.1} parent=43 // pred_region
          %357 = dma.done [#allocation16], 128
        $region68: #{tpu_custom_call.1} parent=43 // pred_fallthru
          _
        %s358 = sand.u32 %s57, 1
        %s359 = scalar_lea.sflag [#allocation7], %s358
        %s360 = sand.u32 %s57, 1
        %s361 = smul.addr %s360, 16
        %s362 = scalar_lea.vmem [#allocation6], %s361
        %p363 = pneg %p70
        %p364 = pneg %p67
        %s365 = sand.u32 %s28, 1
        %s366 = scalar_lea.sflag [#allocation10], %s365
        %s367 = sand.u32 %s85, 1
        %s368 = smul.addr %s367, 32
        %s369 = scalar_lea.vmem [#allocation9], %s368
        %p370 = pneg %p98
        %p371 = pneg %p95
        %p372 = pneg %p119
        %p373 = pneg %p116
        %p374 = pneg %p140
        %p375 = pneg %p137
        %p376 = pneg %p161
        %p377 = pneg %p158
        %p378 = pneg %p182
        %p379 = pneg %p179
        %p380 = pneg %p210
        %p381 = pneg %p207
        %s382 = sand.u32 %s197, 1
        %s383 = scalar_lea.sflag [#allocation8], %s382
        %s384 = sand.u32 %s197, 1
        %s385 = smul.addr %s384, 16
        %s386 = scalar_lea.vmem [#allocation17], %s385
        %s387 = smul.u32 2, %s34
        %s388 = smul.u32 2, %s35
        %s389 = smul.u32 2, %s34
        %p390 = scmp.eq.s32.totalorder %s35, 0
        // Predicated region
        $region69: #{tpu_custom_call.1} parent=43 // pred_check
          %p391 = pneg %p390
        $region70: #{tpu_custom_call.1} parent=43 // pred_check_branch
          %393 = sbr.rel (%p391) target = $region72
        $region71: #{tpu_custom_call.1} parent=43 // pred_region
          %v394 = vld [vmem:[#allocation11] sm:$0xff]
          %v395 = vld [vmem:[%s328] sm:$0xff]
          %v396 = vld [vmem:[%s328 + $0x8] sm:$0xff]
          %v397 = vld [vmem:[#allocation12] sm:$0xff]
          %399 = vset.pattern.permute.xlu0 0
          %400 = vperm.xlu0 %399, %v397
          %v401 = vpop.permute.xlu0 %400
          %vm403 = vcmask 64512
          %v405 = vsel %vm403, %v394, 0
          %407 = vmatprep.subr.mxu0 %v396
          %408 = vmatpush1.msra.mxu0 %v395
          %409 = vmatprep.subr.mxu0 0.0
          %410 = vmatpush1.msra.mxu0 0.0
          %411 = vmatprep.subr.mxu0 0.0
          %412 = vmatpush1.msra.mxu0 0.0
          %413 = vmatprep.subr.mxu0 0.0
          %414 = vmatpush1.msra.mxu0 0.0
          %415 = vmatprep.subr.mxu0 0.0
          %416 = vmatpush1.msra.mxu0 0.0
          %417 = vmatprep.subr.mxu0 0.0
          %418 = vmatpush1.msra.mxu0 0.0
          %419 = vmatprep.subr.mxu0 0.0
          %420 = vmatpush1.msra.mxu0 0.0
          %421 = vmatprep.subr.mxu0 0.0
          %422 = vmatpush1.msra.mxu0 0.0
          %423 = vmatprep.subr.mxu0 0.0
          %424 = vmatpush1.msra.mxu0 0.0
          %425 = vmatprep.subr.mxu0 0.0
          %426 = vmatpush1.msra.mxu0 0.0
          %427 = vmatprep.subr.mxu0 0.0
          %428 = vmatpush1.msra.mxu0 0.0
          %429 = vmatprep.subr.mxu0 0.0
          %430 = vmatpush1.msra.mxu0 0.0
          %431 = vmatprep.subr.mxu0 0.0
          %432 = vmatpush1.msra.mxu0 0.0
          %433 = vmatprep.subr.mxu0 0.0
          %434 = vmatpush1.msra.mxu0 0.0
          %435 = vmatprep.subr.mxu0 0.0
          %436 = vmatpush1.msra.mxu0 0.0
          %437 = vmatprep.subr.mxu0 0.0
          %438 = vmatpush1.msra.mxu0 0.0
          %439 = vmatprep.subr.mxu0 0.0
          %440 = vmatpush1.msra.mxu0 0.0
          %441 = vmatprep.subr.mxu0 0.0
          %442 = vmatpush1.msra.mxu0 0.0
          %443 = vmatprep.subr.mxu0 0.0
          %444 = vmatpush1.msra.mxu0 0.0
          %445 = vmatprep.subr.mxu0 0.0
          %446 = vmatpush1.msra.mxu0 0.0
          %447 = vmatprep.subr.mxu0 0.0
          %448 = vmatpush1.msra.mxu0 0.0
          %449 = vmatprep.subr.mxu0 0.0
          %450 = vmatpush1.msra.mxu0 0.0
          %451 = vmatprep.subr.mxu0 0.0
          %452 = vmatpush1.msra.mxu0 0.0
          %453 = vmatprep.subr.mxu0 0.0
          %454 = vmatpush1.msra.mxu0 0.0
          %455 = vmatprep.subr.mxu0 0.0
          %456 = vmatpush1.msra.mxu0 0.0
          %457 = vmatprep.subr.mxu0 0.0
          %458 = vmatpush1.msra.mxu0 0.0
          %459 = vmatprep.subr.mxu0 0.0
          %460 = vmatpush1.msra.mxu0 0.0
          %461 = vmatprep.subr.mxu0 0.0
          %462 = vmatpush1.msra.mxu0 0.0
          %463 = vmatprep.subr.mxu0 0.0
          %464 = vmatpush1.msra.mxu0 0.0
          %465 = vmatprep.subr.mxu0 0.0
          %466 = vmatpush1.msra.mxu0 0.0
          %467 = vmatprep.subr.mxu0 0.0
          %468 = vmatpush1.msra.mxu0 0.0
          %469 = vmatprep.subr.mxu0 0.0
          %470 = vmatpush1.msra.mxu0 0.0
          %471 = vmatprep.mubr.f32.mxu0 0.0
          %472 = vmatmul.mubr.f32.gmra.mrb[0].mxu0 %v405
          %v473 = vpop.f32.mrb[0].mxu0
          %v474 = vadd.f32 %v401, %v473
          %v475 = vpop.f32.mrb[0].mxu0
          %v476 = vadd.f32 %v401, %v475
          %477 = vdwg.mxu0
          %478 = vst [vmem:[#allocation2] sm:$0xff] %v474
          %479 = vst [vmem:[#allocation2 + $0x8] sm:$0xff] %v476
          %v480 = vlaneseq
          %vm481 = vcmp.ge.s32.totalorder %v480, 0
          %vm482 = vcmp.lt.s32.totalorder %v480, 256
          %vm483 = vmand %vm481, %vm482
          %484 = vst.msk [vmem:[#allocation4] sm:$0x3] %vm483, -1e+30
          %485 = vst.msk [vmem:[#allocation4 + $0x2] sm:$0x3] %vm483, -1e+30
          %486 = vst.msk [vmem:[#allocation5] sm:$0x3] %vm483, 0.0
          %487 = vst.msk [vmem:[#allocation5 + $0x2] sm:$0x3] %vm483, 0.0
          %488 = vst [vmem:[#allocation3] sm:$0xff] 0.0
          %489 = vst [vmem:[#allocation3 + $0x8] sm:$0xff] 0.0
        $region72: #{tpu_custom_call.1} parent=43 // pred_fallthru
          _
        %v490 = vld [vmem:[%s337] sm:$0xff]
        %v491 = vld [vmem:[%s337 + $0x8] sm:$0xff]
        %v492 = vld [vmem:[%s337 + $0x10] sm:$0xff]
        %v493 = vld [vmem:[%s337 + $0x18] sm:$0xff]
        %v494 = vld [vmem:[#allocation2] sm:$0xff]
        %v495 = vld [vmem:[#allocation2 + $0x8] sm:$0xff]
        %496 = vxpose.xlu0.b32.start [1/16] %v490, 128
        %497 = vxpose.xlu0.b32.cont [2/16] 0.0, 128
        %498 = vxpose.xlu0.b32.cont [3/16] 0.0, 128
        %499 = vxpose.xlu0.b32.cont [4/16] 0.0, 128
        %500 = vxpose.xlu0.b32.cont [5/16] 0.0, 128
        %501 = vxpose.xlu0.b32.cont [6/16] 0.0, 128
        %502 = vxpose.xlu0.b32.cont [7/16] 0.0, 128
        %503 = vxpose.xlu0.b32.cont [8/16] 0.0, 128
        %504 = vxpose.xlu0.b32.cont [9/16] 0.0, 128
        %505 = vxpose.xlu0.b32.cont [10/16] 0.0, 128
        %506 = vxpose.xlu0.b32.cont [11/16] 0.0, 128
        %507 = vxpose.xlu0.b32.cont [12/16] 0.0, 128
        %508 = vxpose.xlu0.b32.cont [13/16] 0.0, 128
        %509 = vxpose.xlu0.b32.cont [14/16] 0.0, 128
        %510 = vxpose.xlu0.b32.cont [15/16] 0.0, 128
        %511 = vxpose.xlu0.b32.end [16/16] 0.0, 128
        %v512 = vpop.trf.xlu0
        %v513 = vpop.trf.xlu0
        %v514 = vpop.trf.xlu0
        %v515 = vpop.trf.xlu0
        %v516 = vpop.trf.xlu0
        %v517 = vpop.trf.xlu0
        %v518 = vpop.trf.xlu0
        %v519 = vpop.trf.xlu0
        %v520 = vpop.trf.xlu0
        %v521 = vpop.trf.xlu0
        %v522 = vpop.trf.xlu0
        %v523 = vpop.trf.xlu0
        %v524 = vpop.trf.xlu0
        %v525 = vpop.trf.xlu0
        %v526 = vpop.trf.xlu0
        %v527 = vpop.trf.xlu0
        %528 = vxpose.xlu0.b32.start [1/16] %v491, 128
        %529 = vxpose.xlu0.b32.cont [2/16] 0.0, 128
        %530 = vxpose.xlu0.b32.cont [3/16] 0.0, 128
        %531 = vxpose.xlu0.b32.cont [4/16] 0.0, 128
        %532 = vxpose.xlu0.b32.cont [5/16] 0.0, 128
        %533 = vxpose.xlu0.b32.cont [6/16] 0.0, 128
        %534 = vxpose.xlu0.b32.cont [7/16] 0.0, 128
        %535 = vxpose.xlu0.b32.cont [8/16] 0.0, 128
        %536 = vxpose.xlu0.b32.cont [9/16] 0.0, 128
        %537 = vxpose.xlu0.b32.cont [10/16] 0.0, 128
        %538 = vxpose.xlu0.b32.cont [11/16] 0.0, 128
        %539 = vxpose.xlu0.b32.cont [12/16] 0.0, 128
        %540 = vxpose.xlu0.b32.cont [13/16] 0.0, 128
        %541 = vxpose.xlu0.b32.cont [14/16] 0.0, 128
        %542 = vxpose.xlu0.b32.cont [15/16] 0.0, 128
        %543 = vxpose.xlu0.b32.end [16/16] 0.0, 128
        %v544 = vpop.trf.xlu0
        %v545 = vpop.trf.xlu0
        %v546 = vpop.trf.xlu0
        %v547 = vpop.trf.xlu0
        %v548 = vpop.trf.xlu0
        %v549 = vpop.trf.xlu0
        %v550 = vpop.trf.xlu0
        %v551 = vpop.trf.xlu0
        %v552 = vpop.trf.xlu0
        %v553 = vpop.trf.xlu0
        %v554 = vpop.trf.xlu0
        %v555 = vpop.trf.xlu0
        %v556 = vpop.trf.xlu0
        %v557 = vpop.trf.xlu0
        %v558 = vpop.trf.xlu0
        %v559 = vpop.trf.xlu0
        %vm560 = vcmask 31744
        %v562 = vsel %vm560, %v512, 0
        %v565 = vsel %vm560, %v513, 0
        %v568 = vsel %vm560, %v514, 0
        %v571 = vsel %vm560, %v515, 0
        %v574 = vsel %vm560, %v516, 0
        %v577 = vsel %vm560, %v517, 0
        %v580 = vsel %vm560, %v518, 0
        %v583 = vsel %vm560, %v519, 0
        %v586 = vsel %vm560, %v520, 0
        %v589 = vsel %vm560, %v521, 0
        %v592 = vsel %vm560, %v522, 0
        %v595 = vsel %vm560, %v523, 0
        %v598 = vsel %vm560, %v524, 0
        %v601 = vsel %vm560, %v525, 0
        %v604 = vsel %vm560, %v526, 0
        %v607 = vsel %vm560, %v527, 0
        %v610 = vsel %vm560, %v544, 0
        %v613 = vsel %vm560, %v545, 0
        %v616 = vsel %vm560, %v546, 0
        %v619 = vsel %vm560, %v547, 0
        %v622 = vsel %vm560, %v548, 0
        %v625 = vsel %vm560, %v549, 0
        %v628 = vsel %vm560, %v550, 0
        %v631 = vsel %vm560, %v551, 0
        %v634 = vsel %vm560, %v552, 0
        %v637 = vsel %vm560, %v553, 0
        %v640 = vsel %vm560, %v554, 0
        %v643 = vsel %vm560, %v555, 0
        %v646 = vsel %vm560, %v556, 0
        %v649 = vsel %vm560, %v557, 0
        %v652 = vsel %vm560, %v558, 0
        %v655 = vsel %vm560, %v559, 0
        %vm657 = vcmask 1043456
        %v659 = vsel %vm657, %v494, 0
        %v662 = vsel %vm657, %v495, 0
        %664 = vmatprep.subr.mxu0 %v662
        %665 = vmatpush1.msra.mxu0 %v659
        %666 = vmatprep.subr.mxu0 0.0
        %667 = vmatpush1.msra.mxu0 0.0
        %668 = vmatprep.subr.mxu0 0.0
        %669 = vmatpush1.msra.mxu0 0.0
        %670 = vmatprep.subr.mxu0 0.0
        %671 = vmatpush1.msra.mxu0 0.0
        %672 = vmatprep.subr.mxu0 0.0
        %673 = vmatpush1.msra.mxu0 0.0
        %674 = vmatprep.subr.mxu0 0.0
        %675 = vmatpush1.msra.mxu0 0.0
        %676 = vmatprep.subr.mxu0 0.0
        %677 = vmatpush1.msra.mxu0 0.0
        %678 = vmatprep.subr.mxu0 0.0
        %679 = vmatpush1.msra.mxu0 0.0
        %680 = vmatprep.subr.mxu0 0.0
        %681 = vmatpush1.msra.mxu0 0.0
        %682 = vmatprep.subr.mxu0 0.0
        %683 = vmatpush1.msra.mxu0 0.0
        %684 = vmatprep.subr.mxu0 0.0
        %685 = vmatpush1.msra.mxu0 0.0
        %686 = vmatprep.subr.mxu0 0.0
        %687 = vmatpush1.msra.mxu0 0.0
        %688 = vmatprep.subr.mxu0 0.0
        %689 = vmatpush1.msra.mxu0 0.0
        %690 = vmatprep.subr.mxu0 0.0
        %691 = vmatpush1.msra.mxu0 0.0
        %692 = vmatprep.subr.mxu0 0.0
        %693 = vmatpush1.msra.mxu0 0.0
        %694 = vmatprep.subr.mxu0 0.0
        %695 = vmatpush1.msra.mxu0 0.0
        %696 = vmatprep.subr.mxu0 0.0
        %697 = vmatpush1.msra.mxu0 0.0
        %698 = vmatprep.subr.mxu0 0.0
        %699 = vmatpush1.msra.mxu0 0.0
        %700 = vmatprep.subr.mxu0 0.0
        %701 = vmatpush1.msra.mxu0 0.0
        %702 = vmatprep.subr.mxu0 0.0
        %703 = vmatpush1.msra.mxu0 0.0
        %704 = vmatprep.subr.mxu0 0.0
        %705 = vmatpush1.msra.mxu0 0.0
        %706 = vmatprep.subr.mxu0 0.0
        %707 = vmatpush1.msra.mxu0 0.0
        %708 = vmatprep.subr.mxu0 0.0
        %709 = vmatpush1.msra.mxu0 0.0
        %710 = vmatprep.subr.mxu0 0.0
        %711 = vmatpush1.msra.mxu0 0.0
        %712 = vmatprep.subr.mxu0 0.0
        %713 = vmatpush1.msra.mxu0 0.0
        %714 = vmatprep.subr.mxu0 0.0
        %715 = vmatpush1.msra.mxu0 0.0
        %716 = vmatprep.subr.mxu0 0.0
        %717 = vmatpush1.msra.mxu0 0.0
        %718 = vmatprep.subr.mxu0 0.0
        %719 = vmatpush1.msra.mxu0 0.0
        %720 = vmatprep.subr.mxu0 0.0
        %721 = vmatpush1.msra.mxu0 0.0
        %722 = vmatprep.subr.mxu0 0.0
        %723 = vmatpush1.msra.mxu0 0.0
        %724 = vmatprep.subr.mxu0 0.0
        %725 = vmatpush1.msra.mxu0 0.0
        %726 = vmatprep.subr.mxu0 0.0
        %727 = vmatpush1.msra.mxu0 0.0
        %728 = vmatprep.mubr.f32.mxu0 0.0
        %729 = vmatmul.mubr.f32.gmra.mrb[0].mxu0 %v562
        %v730 = vpop.f32.mrb[0].mxu0
        %v731 = vadd.f32 0.0, %v730
        %v732 = vpop.f32.mrb[0].mxu0
        %v733 = vadd.f32 0.0, %v732
        %734 = vmatprep.mubr.f32.mxu0 0.0
        %735 = vmatmul.mubr.f32.gmra.mrb[0].mxu0 %v565
        %v736 = vpop.f32.mrb[0].mxu0
        %v737 = vadd.f32 0.0, %v736
        %v738 = vpop.f32.mrb[0].mxu0
        %v739 = vadd.f32 0.0, %v738
        %740 = vmatprep.mubr.f32.mxu0 0.0
        %741 = vmatmul.mubr.f32.gmra.mrb[0].mxu0 %v568
        %v742 = vpop.f32.mrb[0].mxu0
        %v743 = vadd.f32 0.0, %v742
        %v744 = vpop.f32.mrb[0].mxu0
        %v745 = vadd.f32 0.0, %v744
        %746 = vmatprep.mubr.f32.mxu0 0.0
        %747 = vmatmul.mubr.f32.gmra.mrb[0].mxu0 %v571
        %v748 = vpop.f32.mrb[0].mxu0
        %v749 = vadd.f32 0.0, %v748
        %v750 = vpop.f32.mrb[0].mxu0
        %v751 = vadd.f32 0.0, %v750
        %752 = vmatprep.mubr.f32.mxu0 0.0
        %753 = vmatmul.mubr.f32.gmra.mrb[0].mxu0 %v574
        %v754 = vpop.f32.mrb[0].mxu0
        %v755 = vadd.f32 0.0, %v754
        %v756 = vpop.f32.mrb[0].mxu0
        %v757 = vadd.f32 0.0, %v756
        %758 = vmatprep.mubr.f32.mxu0 0.0
        %759 = vmatmul.mubr.f32.gmra.mrb[0].mxu0 %v577
        %v760 = vpop.f32.mrb[0].mxu0
        %v761 = vadd.f32 0.0, %v760
        %v762 = vpop.f32.mrb[0].mxu0
        %v763 = vadd.f32 0.0, %v762
        %764 = vmatprep.mubr.f32.mxu0 0.0
        %765 = vmatmul.mubr.f32.gmra.mrb[0].mxu0 %v580
        %v766 = vpop.f32.mrb[0].mxu0
        %v767 = vadd.f32 0.0, %v766
        %v768 = vpop.f32.mrb[0].mxu0
        %v769 = vadd.f32 0.0, %v768
        %770 = vmatprep.mubr.f32.mxu0 0.0
        %771 = vmatmul.mubr.f32.gmra.mrb[0].mxu0 %v583
        %v772 = vpop.f32.mrb[0].mxu0
        %v773 = vadd.f32 0.0, %v772
        %v774 = vpop.f32.mrb[0].mxu0
        %v775 = vadd.f32 0.0, %v774
        %776 = vmatprep.mubr.f32.mxu0 0.0
        %777 = vmatmul.mubr.f32.gmra.mrb[0].mxu0 %v586
        %v778 = vpop.f32.mrb[0].mxu0
        %v779 = vadd.f32 0.0, %v778
        %v780 = vpop.f32.mrb[0].mxu0
        %v781 = vadd.f32 0.0, %v780
        %782 = vmatprep.mubr.f32.mxu0 0.0
        %783 = vmatmul.mubr.f32.gmra.mrb[0].mxu0 %v589
        %v784 = vpop.f32.mrb[0].mxu0
        %v785 = vadd.f32 0.0, %v784
        %v786 = vpop.f32.mrb[0].mxu0
        %v787 = vadd.f32 0.0, %v786
        %788 = vmatprep.mubr.f32.mxu0 0.0
        %789 = vmatmul.mubr.f32.gmra.mrb[0].mxu0 %v592
        %v790 = vpop.f32.mrb[0].mxu0
        %v791 = vadd.f32 0.0, %v790
        %v792 = vpop.f32.mrb[0].mxu0
        %v793 = vadd.f32 0.0, %v792
        %794 = vmatprep.mubr.f32.mxu0 0.0
        %795 = vmatmul.mubr.f32.gmra.mrb[0].mxu0 %v595
        %v796 = vpop.f32.mrb[0].mxu0
        %v797 = vadd.f32 0.0, %v796
        %v798 = vpop.f32.mrb[0].mxu0
        %v799 = vadd.f32 0.0, %v798
        %800 = vmatprep.mubr.f32.mxu0 0.0
        %801 = vmatmul.mubr.f32.gmra.mrb[0].mxu0 %v598
        %v802 = vpop.f32.mrb[0].mxu0
        %v803 = vadd.f32 0.0, %v802
        %v804 = vpop.f32.mrb[0].mxu0
        %v805 = vadd.f32 0.0, %v804
        %806 = vmatprep.mubr.f32.mxu0 0.0
        %807 = vmatmul.mubr.f32.gmra.mrb[0].mxu0 %v601
        %v808 = vpop.f32.mrb[0].mxu0
        %v809 = vadd.f32 0.0, %v808
        %v810 = vpop.f32.mrb[0].mxu0
        %v811 = vadd.f32 0.0, %v810
        %812 = vmatprep.mubr.f32.mxu0 0.0
        %813 = vmatmul.mubr.f32.gmra.mrb[0].mxu0 %v604
        %v814 = vpop.f32.mrb[0].mxu0
        %v815 = vadd.f32 0.0, %v814
        %v816 = vpop.f32.mrb[0].mxu0
        %v817 = vadd.f32 0.0, %v816
        %818 = vmatprep.mubr.f32.mxu0 0.0
        %819 = vmatmul.mubr.f32.gmra.mrb[0].mxu0 %v607
        %v820 = vpop.f32.mrb[0].mxu0
        %v821 = vadd.f32 0.0, %v820
        %v822 = vpop.f32.mrb[0].mxu0
        %v823 = vadd.f32 0.0, %v822
        %824 = vmatprep.mubr.f32.mxu0 0.0
        %825 = vmatmul.mubr.f32.gmra.mrb[0].mxu0 %v610
        %v826 = vpop.f32.mrb[0].mxu0
        %v827 = vadd.f32 0.0, %v826
        %v828 = vpop.f32.mrb[0].mxu0
        %v829 = vadd.f32 0.0, %v828
        %830 = vmatprep.mubr.f32.mxu0 0.0
        %831 = vmatmul.mubr.f32.gmra.mrb[0].mxu0 %v613
        %v832 = vpop.f32.mrb[0].mxu0
        %v833 = vadd.f32 0.0, %v832
        %v834 = vpop.f32.mrb[0].mxu0
        %v835 = vadd.f32 0.0, %v834
        %836 = vmatprep.mubr.f32.mxu0 0.0
        %837 = vmatmul.mubr.f32.gmra.mrb[0].mxu0 %v616
        %v838 = vpop.f32.mrb[0].mxu0
        %v839 = vadd.f32 0.0, %v838
        %v840 = vpop.f32.mrb[0].mxu0
        %v841 = vadd.f32 0.0, %v840
        %842 = vmatprep.mubr.f32.mxu0 0.0
        %843 = vmatmul.mubr.f32.gmra.mrb[0].mxu0 %v619
        %v844 = vpop.f32.mrb[0].mxu0
        %v845 = vadd.f32 0.0, %v844
        %v846 = vpop.f32.mrb[0].mxu0
        %v847 = vadd.f32 0.0, %v846
        %848 = vmatprep.mubr.f32.mxu0 0.0
        %849 = vmatmul.mubr.f32.gmra.mrb[0].mxu0 %v622
        %v850 = vpop.f32.mrb[0].mxu0
        %v851 = vadd.f32 0.0, %v850
        %v852 = vpop.f32.mrb[0].mxu0
        %v853 = vadd.f32 0.0, %v852
        %854 = vmatprep.mubr.f32.mxu0 0.0
        %855 = vmatmul.mubr.f32.gmra.mrb[0].mxu0 %v625
        %v856 = vpop.f32.mrb[0].mxu0
        %v857 = vadd.f32 0.0, %v856
        %v858 = vpop.f32.mrb[0].mxu0
        %v859 = vadd.f32 0.0, %v858
        %860 = vmatprep.mubr.f32.mxu0 0.0
        %861 = vmatmul.mubr.f32.gmra.mrb[0].mxu0 %v628
        %v862 = vpop.f32.mrb[0].mxu0
        %v863 = vadd.f32 0.0, %v862
        %v864 = vpop.f32.mrb[0].mxu0
        %v865 = vadd.f32 0.0, %v864
        %866 = vmatprep.mubr.f32.mxu0 0.0
        %867 = vmatmul.mubr.f32.gmra.mrb[0].mxu0 %v631
        %v868 = vpop.f32.mrb[0].mxu0
        %v869 = vadd.f32 0.0, %v868
        %v870 = vpop.f32.mrb[0].mxu0
        %v871 = vadd.f32 0.0, %v870
        %872 = vmatprep.mubr.f32.mxu0 0.0
        %873 = vmatmul.mubr.f32.gmra.mrb[0].mxu0 %v634
        %v874 = vpop.f32.mrb[0].mxu0
        %v875 = vadd.f32 0.0, %v874
        %v876 = vpop.f32.mrb[0].mxu0
        %v877 = vadd.f32 0.0, %v876
        %878 = vmatprep.mubr.f32.mxu0 0.0
        %879 = vmatmul.mubr.f32.gmra.mrb[0].mxu0 %v637
        %v880 = vpop.f32.mrb[0].mxu0
        %v881 = vadd.f32 0.0, %v880
        %v882 = vpop.f32.mrb[0].mxu0
        %v883 = vadd.f32 0.0, %v882
        %884 = vmatprep.mubr.f32.mxu0 0.0
        %885 = vmatmul.mubr.f32.gmra.mrb[0].mxu0 %v640
        %v886 = vpop.f32.mrb[0].mxu0
        %v887 = vadd.f32 0.0, %v886
        %v888 = vpop.f32.mrb[0].mxu0
        %v889 = vadd.f32 0.0, %v888
        %890 = vmatprep.mubr.f32.mxu0 0.0
        %891 = vmatmul.mubr.f32.gmra.mrb[0].mxu0 %v643
        %v892 = vpop.f32.mrb[0].mxu0
        %v893 = vadd.f32 0.0, %v892
        %v894 = vpop.f32.mrb[0].mxu0
        %v895 = vadd.f32 0.0, %v894
        %896 = vmatprep.mubr.f32.mxu0 0.0
        %897 = vmatmul.mubr.f32.gmra.mrb[0].mxu0 %v646
        %v898 = vpop.f32.mrb[0].mxu0
        %v899 = vadd.f32 0.0, %v898
        %v900 = vpop.f32.mrb[0].mxu0
        %v901 = vadd.f32 0.0, %v900
        %902 = vmatprep.mubr.f32.mxu0 0.0
        %903 = vmatmul.mubr.f32.gmra.mrb[0].mxu0 %v649
        %v904 = vpop.f32.mrb[0].mxu0
        %v905 = vadd.f32 0.0, %v904
        %v906 = vpop.f32.mrb[0].mxu0
        %v907 = vadd.f32 0.0, %v906
        %908 = vmatprep.mubr.f32.mxu0 0.0
        %909 = vmatmul.mubr.f32.gmra.mrb[0].mxu0 %v652
        %v910 = vpop.f32.mrb[0].mxu0
        %v911 = vadd.f32 0.0, %v910
        %v912 = vpop.f32.mrb[0].mxu0
        %v913 = vadd.f32 0.0, %v912
        %914 = vmatprep.mubr.f32.mxu0 0.0
        %915 = vmatmul.mubr.f32.gmra.mrb[0].mxu0 %v655
        %v916 = vpop.f32.mrb[0].mxu0
        %v917 = vadd.f32 0.0, %v916
        %v918 = vpop.f32.mrb[0].mxu0
        %v919 = vadd.f32 0.0, %v918
        %920 = vdwg.mxu0
        %v921 = vld [vmem:[#allocation4] sm:$0x3]
        %v922 = vmax.f32 %v731, %v743
        %v923 = vmax.f32 %v737, %v749
        %v924 = vmax.f32 %v922, %v755
        %v925 = vmax.f32 %v923, %v761
        %v926 = vmax.f32 %v924, %v767
        %v927 = vmax.f32 %v925, %v773
        %v928 = vmax.f32 %v926, %v779
        %v929 = vmax.f32 %v927, %v785
        %v930 = vmax.f32 %v928, %v791
        %v931 = vmax.f32 %v929, %v797
        %v932 = vmax.f32 %v930, %v803
        %v933 = vmax.f32 %v931, %v809
        %v934 = vmax.f32 %v932, %v815
        %v935 = vmax.f32 %v933, %v821
        %v936 = vmax.f32 %v934, %v827
        %v937 = vmax.f32 %v935, %v833
        %v938 = vmax.f32 %v936, %v839
        %v939 = vmax.f32 %v937, %v845
        %v940 = vmax.f32 %v938, %v851
        %v941 = vmax.f32 %v939, %v857
        %v942 = vmax.f32 %v940, %v863
        %v943 = vmax.f32 %v941, %v869
        %v944 = vmax.f32 %v942, %v875
        %v945 = vmax.f32 %v943, %v881
        %v946 = vmax.f32 %v944, %v887
        %v947 = vmax.f32 %v945, %v893
        %v948 = vmax.f32 %v946, %v899
        %v949 = vmax.f32 %v947, %v905
        %v950 = vmax.f32 %v948, %v911
        %v951 = vmax.f32 %v949, %v917
        %v952 = vmax.f32 %v950, %v951
        %v953 = vrot.slane %v952, 4
        %v954 = vmax.f32 %v952, %v953
        %v955 = vrot.slane %v954, 2
        %v956 = vmax.f32 %v954, %v955
        %v957 = vrot.slane %v956, 1
        %v958 = vmax.f32 %v956, %v957
        %v959 = vmax.f32 %v733, %v745
        %v960 = vmax.f32 %v739, %v751
        %v961 = vmax.f32 %v959, %v757
        %v962 = vmax.f32 %v960, %v763
        %v963 = vmax.f32 %v961, %v769
        %v964 = vmax.f32 %v962, %v775
        %v965 = vmax.f32 %v963, %v781
        %v966 = vmax.f32 %v964, %v787
        %v967 = vmax.f32 %v965, %v793
        %v968 = vmax.f32 %v966, %v799
        %v969 = vmax.f32 %v967, %v805
        %v970 = vmax.f32 %v968, %v811
        %v971 = vmax.f32 %v969, %v817
        %v972 = vmax.f32 %v970, %v823
        %v973 = vmax.f32 %v971, %v829
        %v974 = vmax.f32 %v972, %v835
        %v975 = vmax.f32 %v973, %v841
        %v976 = vmax.f32 %v974, %v847
        %v977 = vmax.f32 %v975, %v853
        %v978 = vmax.f32 %v976, %v859
        %v979 = vmax.f32 %v977, %v865
        %v980 = vmax.f32 %v978, %v871
        %v981 = vmax.f32 %v979, %v877
        %v982 = vmax.f32 %v980, %v883
        %v983 = vmax.f32 %v981, %v889
        %v984 = vmax.f32 %v982, %v895
        %v985 = vmax.f32 %v983, %v901
        %v986 = vmax.f32 %v984, %v907
        %v987 = vmax.f32 %v985, %v913
        %v988 = vmax.f32 %v986, %v919
        %v989 = vmax.f32 %v987, %v988
        %v990 = vrot.slane %v989, 4
        %v991 = vmax.f32 %v989, %v990
        %v992 = vrot.slane %v991, 2
        %v993 = vmax.f32 %v991, %v992
        %v994 = vrot.slane %v993, 1
        %v995 = vmax.f32 %v993, %v994
        %v998 = vcombine.low %v958, %v995
        %v1000 = vunpack.c.l.s4 1966171168
        %v1001 = vunpack.c.0.s8 %v1000
        %v1002 = vlaneseq
        %v1003 = vshrl.u32 %v1002, 7
        %v1004 = vsub.s32 %v1001, %v1003
        %v1005 = vrot.slane %v998, %v1004
        %v1007 = vunpack.c.l.s4 1966171168
        %v1008 = vunpack.c.0.s8 %v1007
        %v1009 = vlaneseq
        %v1010 = vshrl.u32 %v1009, 7
        %v1011 = vsub.s32 %v1008, %v1010
        %v1012 = vrot.slane %v1005, %v1011
        %v1014 = vmax.f32 %v921, %v1012
        %v1015 = vsub.f32 %v921, %v1014
        %v1016 = vmul.f32 %v1015, 1.442695
        %v1017 = vpow.pop %v1016
        %v1019 = vlaneseq
        %v1020 = vshrl.u32 %v1019, 7
        %v1021 = vsub.s32 0, %v1020
        %v1022 = vrot.slane %v1014, %v1021
        %v1023 = vlaneseq
        %v1024 = vshrl.u32 %v1023, 7
        %v1025 = vsub.s32 1, %v1024
        %v1026 = vrot.slane %v1014, %v1025
        %v1029 = vsub.f32 %v731, %v1022
        %v1030 = vsub.f32 %v733, %v1026
        %v1031 = vsub.f32 %v737, %v1022
        %v1032 = vsub.f32 %v739, %v1026
        %v1033 = vsub.f32 %v743, %v1022
        %v1034 = vsub.f32 %v745, %v1026
        %v1035 = vsub.f32 %v749, %v1022
        %v1036 = vsub.f32 %v751, %v1026
        %v1037 = vsub.f32 %v755, %v1022
        %v1038 = vsub.f32 %v757, %v1026
        %v1039 = vsub.f32 %v761, %v1022
        %v1040 = vsub.f32 %v763, %v1026
        %v1041 = vsub.f32 %v767, %v1022
        %v1042 = vsub.f32 %v769, %v1026
        %v1043 = vsub.f32 %v773, %v1022
        %v1044 = vsub.f32 %v775, %v1026
        %v1045 = vsub.f32 %v779, %v1022
        %v1046 = vsub.f32 %v781, %v1026
        %v1047 = vsub.f32 %v785, %v1022
        %v1048 = vsub.f32 %v787, %v1026
        %v1049 = vsub.f32 %v791, %v1022
        %v1050 = vsub.f32 %v793, %v1026
        %v1051 = vsub.f32 %v797, %v1022
        %v1052 = vsub.f32 %v799, %v1026
        %v1053 = vsub.f32 %v803, %v1022
        %v1054 = vsub.f32 %v805, %v1026
        %v1055 = vsub.f32 %v809, %v1022
        %v1056 = vsub.f32 %v811, %v1026
        %v1057 = vsub.f32 %v815, %v1022
        %v1058 = vsub.f32 %v817, %v1026
        %v1059 = vsub.f32 %v821, %v1022
        %v1060 = vsub.f32 %v823, %v1026
        %v1061 = vsub.f32 %v827, %v1022
        %v1062 = vsub.f32 %v829, %v1026
        %v1063 = vsub.f32 %v833, %v1022
        %v1064 = vsub.f32 %v835, %v1026
        %v1065 = vsub.f32 %v839, %v1022
        %v1066 = vsub.f32 %v841, %v1026
        %v1067 = vsub.f32 %v845, %v1022
        %v1068 = vsub.f32 %v847, %v1026
        %v1069 = vsub.f32 %v851, %v1022
        %v1070 = vsub.f32 %v853, %v1026
        %v1071 = vsub.f32 %v857, %v1022
        %v1072 = vsub.f32 %v859, %v1026
        %v1073 = vsub.f32 %v863, %v1022
        %v1074 = vsub.f32 %v865, %v1026
        %v1075 = vsub.f32 %v869, %v1022
        %v1076 = vsub.f32 %v871, %v1026
        %v1077 = vsub.f32 %v875, %v1022
        %v1078 = vsub.f32 %v877, %v1026
        %v1079 = vsub.f32 %v881, %v1022
        %v1080 = vsub.f32 %v883, %v1026
        %v1081 = vsub.f32 %v887, %v1022
        %v1082 = vsub.f32 %v889, %v1026
        %v1083 = vsub.f32 %v893, %v1022
        %v1084 = vsub.f32 %v895, %v1026
        %v1085 = vsub.f32 %v899, %v1022
        %v1086 = vsub.f32 %v901, %v1026
        %v1087 = vsub.f32 %v905, %v1022
        %v1088 = vsub.f32 %v907, %v1026
        %v1089 = vsub.f32 %v911, %v1022
        %v1090 = vsub.f32 %v913, %v1026
        %v1091 = vsub.f32 %v917, %v1022
        %v1092 = vsub.f32 %v919, %v1026
        %v1093 = vmul.f32 %v1029, 1.442695
        %v1094 = vpow.pop %v1093
        %v1095 = vmul.f32 %v1030, 1.442695
        %v1096 = vpow.pop %v1095
        %v1097 = vmul.f32 %v1031, 1.442695
        %v1098 = vpow.pop %v1097
        %v1099 = vmul.f32 %v1032, 1.442695
        %v1100 = vpow.pop %v1099
        %v1101 = vmul.f32 %v1033, 1.442695
        %v1102 = vpow.pop %v1101
        %v1103 = vmul.f32 %v1034, 1.442695
        %v1104 = vpow.pop %v1103
        %v1105 = vmul.f32 %v1035, 1.442695
        %v1106 = vpow.pop %v1105
        %v1107 = vmul.f32 %v1036, 1.442695
        %v1108 = vpow.pop %v1107
        %v1109 = vmul.f32 %v1037, 1.442695
        %v1110 = vpow.pop %v1109
        %v1111 = vmul.f32 %v1038, 1.442695
        %v1112 = vpow.pop %v1111
        %v1113 = vmul.f32 %v1039, 1.442695
        %v1114 = vpow.pop %v1113
        %v1115 = vmul.f32 %v1040, 1.442695
        %v1116 = vpow.pop %v1115
        %v1117 = vmul.f32 %v1041, 1.442695
        %v1118 = vpow.pop %v1117
        %v1119 = vmul.f32 %v1042, 1.442695
        %v1120 = vpow.pop %v1119
        %v1121 = vmul.f32 %v1043, 1.442695
        %v1122 = vpow.pop %v1121
        %v1123 = vmul.f32 %v1044, 1.442695
        %v1124 = vpow.pop %v1123
        %v1125 = vmul.f32 %v1045, 1.442695
        %v1126 = vpow.pop %v1125
        %v1127 = vmul.f32 %v1046, 1.442695
        %v1128 = vpow.pop %v1127
        %v1129 = vmul.f32 %v1047, 1.442695
        %v1130 = vpow.pop %v1129
        %v1131 = vmul.f32 %v1048, 1.442695
        %v1132 = vpow.pop %v1131
        %v1133 = vmul.f32 %v1049, 1.442695
        %v1134 = vpow.pop %v1133
        %v1135 = vmul.f32 %v1050, 1.442695
        %v1136 = vpow.pop %v1135
        %v1137 = vmul.f32 %v1051, 1.442695
        %v1138 = vpow.pop %v1137
        %v1139 = vmul.f32 %v1052, 1.442695
        %v1140 = vpow.pop %v1139
        %v1141 = vmul.f32 %v1053, 1.442695
        %v1142 = vpow.pop %v1141
        %v1143 = vmul.f32 %v1054, 1.442695
        %v1144 = vpow.pop %v1143
        %v1145 = vmul.f32 %v1055, 1.442695
        %v1146 = vpow.pop %v1145
        %v1147 = vmul.f32 %v1056, 1.442695
        %v1148 = vpow.pop %v1147
        %v1149 = vmul.f32 %v1057, 1.442695
        %v1150 = vpow.pop %v1149
        %v1151 = vmul.f32 %v1058, 1.442695
        %v1152 = vpow.pop %v1151
        %v1153 = vmul.f32 %v1059, 1.442695
        %v1154 = vpow.pop %v1153
        %v1155 = vmul.f32 %v1060, 1.442695
        %v1156 = vpow.pop %v1155
        %v1157 = vmul.f32 %v1061, 1.442695
        %v1158 = vpow.pop %v1157
        %v1159 = vmul.f32 %v1062, 1.442695
        %v1160 = vpow.pop %v1159
        %v1161 = vmul.f32 %v1063, 1.442695
        %v1162 = vpow.pop %v1161
        %v1163 = vmul.f32 %v1064, 1.442695
        %v1164 = vpow.pop %v1163
        %v1165 = vmul.f32 %v1065, 1.442695
        %v1166 = vpow.pop %v1165
        %v1167 = vmul.f32 %v1066, 1.442695
        %v1168 = vpow.pop %v1167
        %v1169 = vmul.f32 %v1067, 1.442695
        %v1170 = vpow.pop %v1169
        %v1171 = vmul.f32 %v1068, 1.442695
        %v1172 = vpow.pop %v1171
        %v1173 = vmul.f32 %v1069, 1.442695
        %v1174 = vpow.pop %v1173
        %v1175 = vmul.f32 %v1070, 1.442695
        %v1176 = vpow.pop %v1175
        %v1177 = vmul.f32 %v1071, 1.442695
        %v1178 = vpow.pop %v1177
        %v1179 = vmul.f32 %v1072, 1.442695
        %v1180 = vpow.pop %v1179
        %v1181 = vmul.f32 %v1073, 1.442695
        %v1182 = vpow.pop %v1181
        %v1183 = vmul.f32 %v1074, 1.442695
        %v1184 = vpow.pop %v1183
        %v1185 = vmul.f32 %v1075, 1.442695
        %v1186 = vpow.pop %v1185
        %v1187 = vmul.f32 %v1076, 1.442695
        %v1188 = vpow.pop %v1187
        %v1189 = vmul.f32 %v1077, 1.442695
        %v1190 = vpow.pop %v1189
        %v1191 = vmul.f32 %v1078, 1.442695
        %v1192 = vpow.pop %v1191
        %v1193 = vmul.f32 %v1079, 1.442695
        %v1194 = vpow.pop %v1193
        %v1195 = vmul.f32 %v1080, 1.442695
        %v1196 = vpow.pop %v1195
        %v1197 = vmul.f32 %v1081, 1.442695
        %v1198 = vpow.pop %v1197
        %v1199 = vmul.f32 %v1082, 1.442695
        %v1200 = vpow.pop %v1199
        %v1201 = vmul.f32 %v1083, 1.442695
        %v1202 = vpow.pop %v1201
        %v1203 = vmul.f32 %v1084, 1.442695
        %v1204 = vpow.pop %v1203
        %v1205 = vmul.f32 %v1085, 1.442695
        %v1206 = vpow.pop %v1205
        %v1207 = vmul.f32 %v1086, 1.442695
        %v1208 = vpow.pop %v1207
        %v1209 = vmul.f32 %v1087, 1.442695
        %v1210 = vpow.pop %v1209
        %v1211 = vmul.f32 %v1088, 1.442695
        %v1212 = vpow.pop %v1211
        %v1213 = vmul.f32 %v1089, 1.442695
        %v1214 = vpow.pop %v1213
        %v1215 = vmul.f32 %v1090, 1.442695
        %v1216 = vpow.pop %v1215
        %v1217 = vmul.f32 %v1091, 1.442695
        %v1218 = vpow.pop %v1217
        %v1219 = vmul.f32 %v1092, 1.442695
        %v1220 = vpow.pop %v1219
        %v1221 = vld [vmem:[#allocation5] sm:$0x3]
        %v1222 = vmul.f32 %v1017, %v1221
        %v1223 = vadd.f32 %v1094, %v1098
        %v1224 = vadd.f32 %v1223, %v1102
        %v1225 = vadd.f32 %v1224, %v1106
        %v1226 = vadd.f32 %v1225, %v1110
        %v1227 = vadd.f32 %v1226, %v1114
        %v1228 = vadd.f32 %v1227, %v1118
        %v1229 = vadd.f32 %v1228, %v1122
        %v1230 = vadd.f32 %v1229, %v1126
        %v1231 = vadd.f32 %v1230, %v1130
        %v1232 = vadd.f32 %v1231, %v1134
        %v1233 = vadd.f32 %v1232, %v1138
        %v1234 = vadd.f32 %v1233, %v1142
        %v1235 = vadd.f32 %v1234, %v1146
        %v1236 = vadd.f32 %v1235, %v1150
        %v1237 = vadd.f32 %v1236, %v1154
        %v1238 = vadd.f32 %v1237, %v1158
        %v1239 = vadd.f32 %v1238, %v1162
        %v1240 = vadd.f32 %v1239, %v1166
        %v1241 = vadd.f32 %v1240, %v1170
        %v1242 = vadd.f32 %v1241, %v1174
        %v1243 = vadd.f32 %v1242, %v1178
        %v1244 = vadd.f32 %v1243, %v1182
        %v1245 = vadd.f32 %v1244, %v1186
        %v1246 = vadd.f32 %v1245, %v1190
        %v1247 = vadd.f32 %v1246, %v1194
        %v1248 = vadd.f32 %v1247, %v1198
        %v1249 = vadd.f32 %v1248, %v1202
        %v1250 = vadd.f32 %v1249, %v1206
        %v1251 = vadd.f32 %v1250, %v1210
        %v1252 = vadd.f32 %v1251, %v1214
        %v1253 = vadd.f32 %v1252, %v1218
        %v1254 = vrot.slane %v1253, 4
        %v1255 = vadd.f32 %v1253, %v1254
        %v1256 = vrot.slane %v1255, 2
        %v1257 = vadd.f32 %v1255, %v1256
        %v1258 = vrot.slane %v1257, 1
        %v1259 = vadd.f32 %v1257, %v1258
        %v1260 = vadd.f32 %v1096, %v1100
        %v1261 = vadd.f32 %v1260, %v1104
        %v1262 = vadd.f32 %v1261, %v1108
        %v1263 = vadd.f32 %v1262, %v1112
        %v1264 = vadd.f32 %v1263, %v1116
        %v1265 = vadd.f32 %v1264, %v1120
        %v1266 = vadd.f32 %v1265, %v1124
        %v1267 = vadd.f32 %v1266, %v1128
        %v1268 = vadd.f32 %v1267, %v1132
        %v1269 = vadd.f32 %v1268, %v1136
        %v1270 = vadd.f32 %v1269, %v1140
        %v1271 = vadd.f32 %v1270, %v1144
        %v1272 = vadd.f32 %v1271, %v1148
        %v1273 = vadd.f32 %v1272, %v1152
        %v1274 = vadd.f32 %v1273, %v1156
        %v1275 = vadd.f32 %v1274, %v1160
        %v1276 = vadd.f32 %v1275, %v1164
        %v1277 = vadd.f32 %v1276, %v1168
        %v1278 = vadd.f32 %v1277, %v1172
        %v1279 = vadd.f32 %v1278, %v1176
        %v1280 = vadd.f32 %v1279, %v1180
        %v1281 = vadd.f32 %v1280, %v1184
        %v1282 = vadd.f32 %v1281, %v1188
        %v1283 = vadd.f32 %v1282, %v1192
        %v1284 = vadd.f32 %v1283, %v1196
        %v1285 = vadd.f32 %v1284, %v1200
        %v1286 = vadd.f32 %v1285, %v1204
        %v1287 = vadd.f32 %v1286, %v1208
        %v1288 = vadd.f32 %v1287, %v1212
        %v1289 = vadd.f32 %v1288, %v1216
        %v1290 = vadd.f32 %v1289, %v1220
        %v1291 = vrot.slane %v1290, 4
        %v1292 = vadd.f32 %v1290, %v1291
        %v1293 = vrot.slane %v1292, 2
        %v1294 = vadd.f32 %v1292, %v1293
        %v1295 = vrot.slane %v1294, 1
        %v1296 = vadd.f32 %v1294, %v1295
        %v1299 = vcombine.low %v1259, %v1296
        %v1301 = vunpack.c.l.s4 1966171168
        %v1302 = vunpack.c.0.s8 %v1301
        %v1303 = vlaneseq
        %v1304 = vshrl.u32 %v1303, 7
        %v1305 = vsub.s32 %v1302, %v1304
        %v1306 = vrot.slane %v1299, %v1305
        %v1308 = vunpack.c.l.s4 1966171168
        %v1309 = vunpack.c.0.s8 %v1308
        %v1310 = vlaneseq
        %v1311 = vshrl.u32 %v1310, 7
        %v1312 = vsub.s32 %v1309, %v1311
        %v1313 = vrot.slane %v1306, %v1312
        %v1315 = vadd.f32 %v1222, %v1313
        %v1316 = vlaneseq
        %vm1317 = vcmp.ge.s32.totalorder %v1316, 0
        %vm1318 = vcmp.lt.s32.totalorder %v1316, 256
        %vm1319 = vmand %vm1317, %vm1318
        %1320 = vst.msk [vmem:[#allocation5] sm:$0x3] %vm1319, %v1315
        %1321 = vst.msk [vmem:[#allocation4] sm:$0x3] %vm1319, %v1014
        %1322 = vmatprep.subr.mxu0 %v1096
        %1323 = vmatpush1.msra.mxu0 %v1094
        %1324 = vmatprep.subr.mxu0 %v1100
        %1325 = vmatpush1.msra.mxu0 %v1098
        %1326 = vmatprep.subr.mxu0 %v1104
        %1327 = vmatpush1.msra.mxu0 %v1102
        %1328 = vmatprep.subr.mxu0 %v1108
        %1329 = vmatpush1.msra.mxu0 %v1106
        %1330 = vmatprep.subr.mxu0 %v1112
        %1331 = vmatpush1.msra.mxu0 %v1110
        %1332 = vmatprep.subr.mxu0 %v1116
        %1333 = vmatpush1.msra.mxu0 %v1114
        %1334 = vmatprep.subr.mxu0 %v1120
        %1335 = vmatpush1.msra.mxu0 %v1118
        %1336 = vmatprep.subr.mxu0 %v1124
        %1337 = vmatpush1.msra.mxu0 %v1122
        %1338 = vmatprep.subr.mxu0 %v1128
        %1339 = vmatpush1.msra.mxu0 %v1126
        %1340 = vmatprep.subr.mxu0 %v1132
        %1341 = vmatpush1.msra.mxu0 %v1130
        %1342 = vmatprep.subr.mxu0 %v1136
        %1343 = vmatpush1.msra.mxu0 %v1134
        %1344 = vmatprep.subr.mxu0 %v1140
        %1345 = vmatpush1.msra.mxu0 %v1138
        %1346 = vmatprep.subr.mxu0 %v1144
        %1347 = vmatpush1.msra.mxu0 %v1142
        %1348 = vmatprep.subr.mxu0 %v1148
        %1349 = vmatpush1.msra.mxu0 %v1146
        %1350 = vmatprep.subr.mxu0 %v1152
        %1351 = vmatpush1.msra.mxu0 %v1150
        %1352 = vmatprep.subr.mxu0 %v1156
        %1353 = vmatpush1.msra.mxu0 %v1154
        %1354 = vmatprep.subr.mxu0 %v1160
        %1355 = vmatpush1.msra.mxu0 %v1158
        %1356 = vmatprep.subr.mxu0 %v1164
        %1357 = vmatpush1.msra.mxu0 %v1162
        %1358 = vmatprep.subr.mxu0 %v1168
        %1359 = vmatpush1.msra.mxu0 %v1166
        %1360 = vmatprep.subr.mxu0 %v1172
        %1361 = vmatpush1.msra.mxu0 %v1170
        %1362 = vmatprep.subr.mxu0 %v1176
        %1363 = vmatpush1.msra.mxu0 %v1174
        %1364 = vmatprep.subr.mxu0 %v1180
        %1365 = vmatpush1.msra.mxu0 %v1178
        %1366 = vmatprep.subr.mxu0 %v1184
        %1367 = vmatpush1.msra.mxu0 %v1182
        %1368 = vmatprep.subr.mxu0 %v1188
        %1369 = vmatpush1.msra.mxu0 %v1186
        %1370 = vmatprep.subr.mxu0 %v1192
        %1371 = vmatpush1.msra.mxu0 %v1190
        %1372 = vmatprep.subr.mxu0 %v1196
        %1373 = vmatpush1.msra.mxu0 %v1194
        %1374 = vmatprep.subr.mxu0 %v1200
        %1375 = vmatpush1.msra.mxu0 %v1198
        %1376 = vmatprep.subr.mxu0 %v1204
        %1377 = vmatpush1.msra.mxu0 %v1202
        %1378 = vmatprep.subr.mxu0 %v1208
        %1379 = vmatpush1.msra.mxu0 %v1206
        %1380 = vmatprep.subr.mxu0 %v1212
        %1381 = vmatpush1.msra.mxu0 %v1210
        %1382 = vmatprep.subr.mxu0 %v1216
        %1383 = vmatpush1.msra.mxu0 %v1214
        %1384 = vmatprep.subr.mxu0 %v1220
        %1385 = vmatpush1.msra.mxu0 %v1218
        %1386 = vmatprep.mubr.f32.mxu0 %v493
        %1387 = vmatmul.mubr.f32.gmra.mrb[0].mxu0 %v492
        %v1388 = vpop.f32.mrb[0].mxu0
        %v1389 = vadd.f32 0.0, %v1388
        %v1390 = vpop.f32.mrb[0].mxu0
        %v1391 = vadd.f32 0.0, %v1390
        %1392 = vdwg.mxu0
        %v1393 = vld [vmem:[#allocation3] sm:$0xf]
        %v1394 = vld [vmem:[#allocation3 + $0x8] sm:$0xf]
        %v1396 = vlaneseq
        %v1397 = vshrl.u32 %v1396, 7
        %v1398 = vsub.s32 0, %v1397
        %v1399 = vrot.slane %v1017, %v1398
        %v1400 = vlaneseq
        %v1401 = vshrl.u32 %v1400, 7
        %v1402 = vsub.s32 1, %v1401
        %v1403 = vrot.slane %v1017, %v1402
        %v1406 = vmul.f32 %v1399, %v1393
        %v1407 = vmul.f32 %v1403, %v1394
        %v1408 = vadd.f32 %v1406, %v1389
        %v1409 = vadd.f32 %v1407, %v1391
        %1410 = vst [vmem:[#allocation3] sm:$0xf] %v1408
        %1411 = vst [vmem:[#allocation3 + $0x8] sm:$0xf] %v1409
        %v1414 = vrot.slane %v490, 4
        %v1415 = vrot.slane %v491, 4
        %1418 = vxpose.xlu0.b32.start [1/16] %v1414, 128
        %1419 = vxpose.xlu0.b32.cont [2/16] 0.0, 128
        %1420 = vxpose.xlu0.b32.cont [3/16] 0.0, 128
        %1421 = vxpose.xlu0.b32.cont [4/16] 0.0, 128
        %1422 = vxpose.xlu0.b32.cont [5/16] 0.0, 128
        %1423 = vxpose.xlu0.b32.cont [6/16] 0.0, 128
        %1424 = vxpose.xlu0.b32.cont [7/16] 0.0, 128
        %1425 = vxpose.xlu0.b32.cont [8/16] 0.0, 128
        %1426 = vxpose.xlu0.b32.cont [9/16] 0.0, 128
        %1427 = vxpose.xlu0.b32.cont [10/16] 0.0, 128
        %1428 = vxpose.xlu0.b32.cont [11/16] 0.0, 128
        %1429 = vxpose.xlu0.b32.cont [12/16] 0.0, 128
        %1430 = vxpose.xlu0.b32.cont [13/16] 0.0, 128
        %1431 = vxpose.xlu0.b32.cont [14/16] 0.0, 128
        %1432 = vxpose.xlu0.b32.cont [15/16] 0.0, 128
        %1433 = vxpose.xlu0.b32.end [16/16] 0.0, 128
        %v1434 = vpop.trf.xlu0
        %v1435 = vpop.trf.xlu0
        %v1436 = vpop.trf.xlu0
        %v1437 = vpop.trf.xlu0
        %v1438 = vpop.trf.xlu0
        %v1439 = vpop.trf.xlu0
        %v1440 = vpop.trf.xlu0
        %v1441 = vpop.trf.xlu0
        %v1442 = vpop.trf.xlu0
        %v1443 = vpop.trf.xlu0
        %v1444 = vpop.trf.xlu0
        %v1445 = vpop.trf.xlu0
        %v1446 = vpop.trf.xlu0
        %v1447 = vpop.trf.xlu0
        %v1448 = vpop.trf.xlu0
        %v1449 = vpop.trf.xlu0
        %1450 = vxpose.xlu0.b32.start [1/16] %v1415, 128
        %1451 = vxpose.xlu0.b32.cont [2/16] 0.0, 128
        %1452 = vxpose.xlu0.b32.cont [3/16] 0.0, 128
        %1453 = vxpose.xlu0.b32.cont [4/16] 0.0, 128
        %1454 = vxpose.xlu0.b32.cont [5/16] 0.0, 128
        %1455 = vxpose.xlu0.b32.cont [6/16] 0.0, 128
        %1456 = vxpose.xlu0.b32.cont [7/16] 0.0, 128
        %1457 = vxpose.xlu0.b32.cont [8/16] 0.0, 128
        %1458 = vxpose.xlu0.b32.cont [9/16] 0.0, 128
        %1459 = vxpose.xlu0.b32.cont [10/16] 0.0, 128
        %1460 = vxpose.xlu0.b32.cont [11/16] 0.0, 128
        %1461 = vxpose.xlu0.b32.cont [12/16] 0.0, 128
        %1462 = vxpose.xlu0.b32.cont [13/16] 0.0, 128
        %1463 = vxpose.xlu0.b32.cont [14/16] 0.0, 128
        %1464 = vxpose.xlu0.b32.cont [15/16] 0.0, 128
        %1465 = vxpose.xlu0.b32.end [16/16] 0.0, 128
        %v1466 = vpop.trf.xlu0
        %v1467 = vpop.trf.xlu0
        %v1468 = vpop.trf.xlu0
        %v1469 = vpop.trf.xlu0
        %v1470 = vpop.trf.xlu0
        %v1471 = vpop.trf.xlu0
        %v1472 = vpop.trf.xlu0
        %v1473 = vpop.trf.xlu0
        %v1474 = vpop.trf.xlu0
        %v1475 = vpop.trf.xlu0
        %v1476 = vpop.trf.xlu0
        %v1477 = vpop.trf.xlu0
        %v1478 = vpop.trf.xlu0
        %v1479 = vpop.trf.xlu0
        %v1480 = vpop.trf.xlu0
        %v1481 = vpop.trf.xlu0
        %v1482 = vrot.slane %v494, 4
        %v1483 = vrot.slane %v495, 4
        %v1485 = vsel %vm560, %v1434, 0
        %v1488 = vsel %vm560, %v1435, 0
        %v1491 = vsel %vm560, %v1436, 0
        %v1494 = vsel %vm560, %v1437, 0
        %v1497 = vsel %vm560, %v1438, 0
        %v1500 = vsel %vm560, %v1439, 0
        %v1503 = vsel %vm560, %v1440, 0
        %v1506 = vsel %vm560, %v1441, 0
        %v1509 = vsel %vm560, %v1442, 0
        %v1512 = vsel %vm560, %v1443, 0
        %v1515 = vsel %vm560, %v1444, 0
        %v1518 = vsel %vm560, %v1445, 0
        %v1521 = vsel %vm560, %v1446, 0
        %v1524 = vsel %vm560, %v1447, 0
        %v1527 = vsel %vm560, %v1448, 0
        %v1530 = vsel %vm560, %v1449, 0
        %v1533 = vsel %vm560, %v1466, 0
        %v1536 = vsel %vm560, %v1467, 0
        %v1539 = vsel %vm560, %v1468, 0
        %v1542 = vsel %vm560, %v1469, 0
        %v1545 = vsel %vm560, %v1470, 0
        %v1548 = vsel %vm560, %v1471, 0
        %v1551 = vsel %vm560, %v1472, 0
        %v1554 = vsel %vm560, %v1473, 0
        %v1557 = vsel %vm560, %v1474, 0
        %v1560 = vsel %vm560, %v1475, 0
        %v1563 = vsel %vm560, %v1476, 0
        %v1566 = vsel %vm560, %v1477, 0
        %v1569 = vsel %vm560, %v1478, 0
        %v1572 = vsel %vm560, %v1479, 0
        %v1575 = vsel %vm560, %v1480, 0
        %v1578 = vsel %vm560, %v1481, 0
        %v1580 = vsel %vm657, %v1482, 0
        %v1582 = vsel %vm657, %v1483, 0
        %1584 = vmatprep.subr.mxu0 %v1582
        %1585 = vmatpush1.msra.mxu0 %v1580
        %1586 = vmatprep.subr.mxu0 0.0
        %1587 = vmatpush1.msra.mxu0 0.0
        %1588 = vmatprep.subr.mxu0 0.0
        %1589 = vmatpush1.msra.mxu0 0.0
        %1590 = vmatprep.subr.mxu0 0.0
        %1591 = vmatpush1.msra.mxu0 0.0
        %1592 = vmatprep.subr.mxu0 0.0
        %1593 = vmatpush1.msra.mxu0 0.0
        %1594 = vmatprep.subr.mxu0 0.0
        %1595 = vmatpush1.msra.mxu0 0.0
        %1596 = vmatprep.subr.mxu0 0.0
        %1597 = vmatpush1.msra.mxu0 0.0
        %1598 = vmatprep.subr.mxu0 0.0
        %1599 = vmatpush1.msra.mxu0 0.0
        %1600 = vmatprep.subr.mxu0 0.0
        %1601 = vmatpush1.msra.mxu0 0.0
        %1602 = vmatprep.subr.mxu0 0.0
        %1603 = vmatpush1.msra.mxu0 0.0
        %1604 = vmatprep.subr.mxu0 0.0
        %1605 = vmatpush1.msra.mxu0 0.0
        %1606 = vmatprep.subr.mxu0 0.0
        %1607 = vmatpush1.msra.mxu0 0.0
        %1608 = vmatprep.subr.mxu0 0.0
        %1609 = vmatpush1.msra.mxu0 0.0
        %1610 = vmatprep.subr.mxu0 0.0
        %1611 = vmatpush1.msra.mxu0 0.0
        %1612 = vmatprep.subr.mxu0 0.0
        %1613 = vmatpush1.msra.mxu0 0.0
        %1614 = vmatprep.subr.mxu0 0.0
        %1615 = vmatpush1.msra.mxu0 0.0
        %1616 = vmatprep.subr.mxu0 0.0
        %1617 = vmatpush1.msra.mxu0 0.0
        %1618 = vmatprep.subr.mxu0 0.0
        %1619 = vmatpush1.msra.mxu0 0.0
        %1620 = vmatprep.subr.mxu0 0.0
        %1621 = vmatpush1.msra.mxu0 0.0
        %1622 = vmatprep.subr.mxu0 0.0
        %1623 = vmatpush1.msra.mxu0 0.0
        %1624 = vmatprep.subr.mxu0 0.0
        %1625 = vmatpush1.msra.mxu0 0.0
        %1626 = vmatprep.subr.mxu0 0.0
        %1627 = vmatpush1.msra.mxu0 0.0
        %1628 = vmatprep.subr.mxu0 0.0
        %1629 = vmatpush1.msra.mxu0 0.0
        %1630 = vmatprep.subr.mxu0 0.0
        %1631 = vmatpush1.msra.mxu0 0.0
        %1632 = vmatprep.subr.mxu0 0.0
        %1633 = vmatpush1.msra.mxu0 0.0
        %1634 = vmatprep.subr.mxu0 0.0
        %1635 = vmatpush1.msra.mxu0 0.0
        %1636 = vmatprep.subr.mxu0 0.0
        %1637 = vmatpush1.msra.mxu0 0.0
        %1638 = vmatprep.subr.mxu0 0.0
        %1639 = vmatpush1.msra.mxu0 0.0
        %1640 = vmatprep.subr.mxu0 0.0
        %1641 = vmatpush1.msra.mxu0 0.0
        %1642 = vmatprep.subr.mxu0 0.0
        %1643 = vmatpush1.msra.mxu0 0.0
        %1644 = vmatprep.subr.mxu0 0.0
        %1645 = vmatpush1.msra.mxu0 0.0
        %1646 = vmatprep.subr.mxu0 0.0
        %1647 = vmatpush1.msra.mxu0 0.0
        %1648 = vmatprep.mubr.f32.mxu0 0.0
        %1649 = vmatmul.mubr.f32.gmra.mrb[0].mxu0 %v1485
        %v1650 = vpop.f32.mrb[0].mxu0
        %v1651 = vadd.f32 0.0, %v1650
        %v1652 = vpop.f32.mrb[0].mxu0
        %v1653 = vadd.f32 0.0, %v1652
        %1654 = vmatprep.mubr.f32.mxu0 0.0
        %1655 = vmatmul.mubr.f32.gmra.mrb[0].mxu0 %v1488
        %v1656 = vpop.f32.mrb[0].mxu0
        %v1657 = vadd.f32 0.0, %v1656
        %v1658 = vpop.f32.mrb[0].mxu0
        %v1659 = vadd.f32 0.0, %v1658
        %1660 = vmatprep.mubr.f32.mxu0 0.0
        %1661 = vmatmul.mubr.f32.gmra.mrb[0].mxu0 %v1491
        %v1662 = vpop.f32.mrb[0].mxu0
        %v1663 = vadd.f32 0.0, %v1662
        %v1664 = vpop.f32.mrb[0].mxu0
        %v1665 = vadd.f32 0.0, %v1664
        %1666 = vmatprep.mubr.f32.mxu0 0.0
        %1667 = vmatmul.mubr.f32.gmra.mrb[0].mxu0 %v1494
        %v1668 = vpop.f32.mrb[0].mxu0
        %v1669 = vadd.f32 0.0, %v1668
        %v1670 = vpop.f32.mrb[0].mxu0
        %v1671 = vadd.f32 0.0, %v1670
        %1672 = vmatprep.mubr.f32.mxu0 0.0
        %1673 = vmatmul.mubr.f32.gmra.mrb[0].mxu0 %v1497
        %v1674 = vpop.f32.mrb[0].mxu0
        %v1675 = vadd.f32 0.0, %v1674
        %v1676 = vpop.f32.mrb[0].mxu0
        %v1677 = vadd.f32 0.0, %v1676
        %1678 = vmatprep.mubr.f32.mxu0 0.0
        %1679 = vmatmul.mubr.f32.gmra.mrb[0].mxu0 %v1500
        %v1680 = vpop.f32.mrb[0].mxu0
        %v1681 = vadd.f32 0.0, %v1680
        %v1682 = vpop.f32.mrb[0].mxu0
        %v1683 = vadd.f32 0.0, %v1682
        %1684 = vmatprep.mubr.f32.mxu0 0.0
        %1685 = vmatmul.mubr.f32.gmra.mrb[0].mxu0 %v1503
        %v1686 = vpop.f32.mrb[0].mxu0
        %v1687 = vadd.f32 0.0, %v1686
        %v1688 = vpop.f32.mrb[0].mxu0
        %v1689 = vadd.f32 0.0, %v1688
        %1690 = vmatprep.mubr.f32.mxu0 0.0
        %1691 = vmatmul.mubr.f32.gmra.mrb[0].mxu0 %v1506
        %v1692 = vpop.f32.mrb[0].mxu0
        %v1693 = vadd.f32 0.0, %v1692
        %v1694 = vpop.f32.mrb[0].mxu0
        %v1695 = vadd.f32 0.0, %v1694
        %1696 = vmatprep.mubr.f32.mxu0 0.0
        %1697 = vmatmul.mubr.f32.gmra.mrb[0].mxu0 %v1509
        %v1698 = vpop.f32.mrb[0].mxu0
        %v1699 = vadd.f32 0.0, %v1698
        %v1700 = vpop.f32.mrb[0].mxu0
        %v1701 = vadd.f32 0.0, %v1700
        %1702 = vmatprep.mubr.f32.mxu0 0.0
        %1703 = vmatmul.mubr.f32.gmra.mrb[0].mxu0 %v1512
        %v1704 = vpop.f32.mrb[0].mxu0
        %v1705 = vadd.f32 0.0, %v1704
        %v1706 = vpop.f32.mrb[0].mxu0
        %v1707 = vadd.f32 0.0, %v1706
        %1708 = vmatprep.mubr.f32.mxu0 0.0
        %1709 = vmatmul.mubr.f32.gmra.mrb[0].mxu0 %v1515
        %v1710 = vpop.f32.mrb[0].mxu0
        %v1711 = vadd.f32 0.0, %v1710
        %v1712 = vpop.f32.mrb[0].mxu0
        %v1713 = vadd.f32 0.0, %v1712
        %1714 = vmatprep.mubr.f32.mxu0 0.0
        %1715 = vmatmul.mubr.f32.gmra.mrb[0].mxu0 %v1518
        %v1716 = vpop.f32.mrb[0].mxu0
        %v1717 = vadd.f32 0.0, %v1716
        %v1718 = vpop.f32.mrb[0].mxu0
        %v1719 = vadd.f32 0.0, %v1718
        %1720 = vmatprep.mubr.f32.mxu0 0.0
        %1721 = vmatmul.mubr.f32.gmra.mrb[0].mxu0 %v1521
        %v1722 = vpop.f32.mrb[0].mxu0
        %v1723 = vadd.f32 0.0, %v1722
        %v1724 = vpop.f32.mrb[0].mxu0
        %v1725 = vadd.f32 0.0, %v1724
        %1726 = vmatprep.mubr.f32.mxu0 0.0
        %1727 = vmatmul.mubr.f32.gmra.mrb[0].mxu0 %v1524
        %v1728 = vpop.f32.mrb[0].mxu0
        %v1729 = vadd.f32 0.0, %v1728
        %v1730 = vpop.f32.mrb[0].mxu0
        %v1731 = vadd.f32 0.0, %v1730
        %1732 = vmatprep.mubr.f32.mxu0 0.0
        %1733 = vmatmul.mubr.f32.gmra.mrb[0].mxu0 %v1527
        %v1734 = vpop.f32.mrb[0].mxu0
        %v1735 = vadd.f32 0.0, %v1734
        %v1736 = vpop.f32.mrb[0].mxu0
        %v1737 = vadd.f32 0.0, %v1736
        %1738 = vmatprep.mubr.f32.mxu0 0.0
        %1739 = vmatmul.mubr.f32.gmra.mrb[0].mxu0 %v1530
        %v1740 = vpop.f32.mrb[0].mxu0
        %v1741 = vadd.f32 0.0, %v1740
        %v1742 = vpop.f32.mrb[0].mxu0
        %v1743 = vadd.f32 0.0, %v1742
        %1744 = vmatprep.mubr.f32.mxu0 0.0
        %1745 = vmatmul.mubr.f32.gmra.mrb[0].mxu0 %v1533
        %v1746 = vpop.f32.mrb[0].mxu0
        %v1747 = vadd.f32 0.0, %v1746
        %v1748 = vpop.f32.mrb[0].mxu0
        %v1749 = vadd.f32 0.0, %v1748
        %1750 = vmatprep.mubr.f32.mxu0 0.0
        %1751 = vmatmul.mubr.f32.gmra.mrb[0].mxu0 %v1536
        %v1752 = vpop.f32.mrb[0].mxu0
        %v1753 = vadd.f32 0.0, %v1752
        %v1754 = vpop.f32.mrb[0].mxu0
        %v1755 = vadd.f32 0.0, %v1754
        %1756 = vmatprep.mubr.f32.mxu0 0.0
        %1757 = vmatmul.mubr.f32.gmra.mrb[0].mxu0 %v1539
        %v1758 = vpop.f32.mrb[0].mxu0
        %v1759 = vadd.f32 0.0, %v1758
        %v1760 = vpop.f32.mrb[0].mxu0
        %v1761 = vadd.f32 0.0, %v1760
        %1762 = vmatprep.mubr.f32.mxu0 0.0
        %1763 = vmatmul.mubr.f32.gmra.mrb[0].mxu0 %v1542
        %v1764 = vpop.f32.mrb[0].mxu0
        %v1765 = vadd.f32 0.0, %v1764
        %v1766 = vpop.f32.mrb[0].mxu0
        %v1767 = vadd.f32 0.0, %v1766
        %1768 = vmatprep.mubr.f32.mxu0 0.0
        %1769 = vmatmul.mubr.f32.gmra.mrb[0].mxu0 %v1545
        %v1770 = vpop.f32.mrb[0].mxu0
        %v1771 = vadd.f32 0.0, %v1770
        %v1772 = vpop.f32.mrb[0].mxu0
        %v1773 = vadd.f32 0.0, %v1772
        %1774 = vmatprep.mubr.f32.mxu0 0.0
        %1775 = vmatmul.mubr.f32.gmra.mrb[0].mxu0 %v1548
        %v1776 = vpop.f32.mrb[0].mxu0
        %v1777 = vadd.f32 0.0, %v1776
        %v1778 = vpop.f32.mrb[0].mxu0
        %v1779 = vadd.f32 0.0, %v1778
        %1780 = vmatprep.mubr.f32.mxu0 0.0
        %1781 = vmatmul.mubr.f32.gmra.mrb[0].mxu0 %v1551
        %v1782 = vpop.f32.mrb[0].mxu0
        %v1783 = vadd.f32 0.0, %v1782
        %v1784 = vpop.f32.mrb[0].mxu0
        %v1785 = vadd.f32 0.0, %v1784
        %1786 = vmatprep.mubr.f32.mxu0 0.0
        %1787 = vmatmul.mubr.f32.gmra.mrb[0].mxu0 %v1554
        %v1788 = vpop.f32.mrb[0].mxu0
        %v1789 = vadd.f32 0.0, %v1788
        %v1790 = vpop.f32.mrb[0].mxu0
        %v1791 = vadd.f32 0.0, %v1790
        %1792 = vmatprep.mubr.f32.mxu0 0.0
        %1793 = vmatmul.mubr.f32.gmra.mrb[0].mxu0 %v1557
        %v1794 = vpop.f32.mrb[0].mxu0
        %v1795 = vadd.f32 0.0, %v1794
        %v1796 = vpop.f32.mrb[0].mxu0
        %v1797 = vadd.f32 0.0, %v1796
        %1798 = vmatprep.mubr.f32.mxu0 0.0
        %1799 = vmatmul.mubr.f32.gmra.mrb[0].mxu0 %v1560
        %v1800 = vpop.f32.mrb[0].mxu0
        %v1801 = vadd.f32 0.0, %v1800
        %v1802 = vpop.f32.mrb[0].mxu0
        %v1803 = vadd.f32 0.0, %v1802
        %1804 = vmatprep.mubr.f32.mxu0 0.0
        %1805 = vmatmul.mubr.f32.gmra.mrb[0].mxu0 %v1563
        %v1806 = vpop.f32.mrb[0].mxu0
        %v1807 = vadd.f32 0.0, %v1806
        %v1808 = vpop.f32.mrb[0].mxu0
        %v1809 = vadd.f32 0.0, %v1808
        %1810 = vmatprep.mubr.f32.mxu0 0.0
        %1811 = vmatmul.mubr.f32.gmra.mrb[0].mxu0 %v1566
        %v1812 = vpop.f32.mrb[0].mxu0
        %v1813 = vadd.f32 0.0, %v1812
        %v1814 = vpop.f32.mrb[0].mxu0
        %v1815 = vadd.f32 0.0, %v1814
        %1816 = vmatprep.mubr.f32.mxu0 0.0
        %1817 = vmatmul.mubr.f32.gmra.mrb[0].mxu0 %v1569
        %v1818 = vpop.f32.mrb[0].mxu0
        %v1819 = vadd.f32 0.0, %v1818
        %v1820 = vpop.f32.mrb[0].mxu0
        %v1821 = vadd.f32 0.0, %v1820
        %1822 = vmatprep.mubr.f32.mxu0 0.0
        %1823 = vmatmul.mubr.f32.gmra.mrb[0].mxu0 %v1572
        %v1824 = vpop.f32.mrb[0].mxu0
        %v1825 = vadd.f32 0.0, %v1824
        %v1826 = vpop.f32.mrb[0].mxu0
        %v1827 = vadd.f32 0.0, %v1826
        %1828 = vmatprep.mubr.f32.mxu0 0.0
        %1829 = vmatmul.mubr.f32.gmra.mrb[0].mxu0 %v1575
        %v1830 = vpop.f32.mrb[0].mxu0
        %v1831 = vadd.f32 0.0, %v1830
        %v1832 = vpop.f32.mrb[0].mxu0
        %v1833 = vadd.f32 0.0, %v1832
        %1834 = vmatprep.mubr.f32.mxu0 0.0
        %1835 = vmatmul.mubr.f32.gmra.mrb[0].mxu0 %v1578
        %v1836 = vpop.f32.mrb[0].mxu0
        %v1837 = vadd.f32 0.0, %v1836
        %v1838 = vpop.f32.mrb[0].mxu0
        %v1839 = vadd.f32 0.0, %v1838
        %1840 = vdwg.mxu0
        %s1841 = scalar_lea.vmem [#allocation4], 2
        %v1842 = vld [vmem:[%s1841] sm:$0x3]
        %v1843 = vmax.f32 %v1651, %v1663
        %v1844 = vmax.f32 %v1657, %v1669
        %v1845 = vmax.f32 %v1843, %v1675
        %v1846 = vmax.f32 %v1844, %v1681
        %v1847 = vmax.f32 %v1845, %v1687
        %v1848 = vmax.f32 %v1846, %v1693
        %v1849 = vmax.f32 %v1847, %v1699
        %v1850 = vmax.f32 %v1848, %v1705
        %v1851 = vmax.f32 %v1849, %v1711
        %v1852 = vmax.f32 %v1850, %v1717
        %v1853 = vmax.f32 %v1851, %v1723
        %v1854 = vmax.f32 %v1852, %v1729
        %v1855 = vmax.f32 %v1853, %v1735
        %v1856 = vmax.f32 %v1854, %v1741
        %v1857 = vmax.f32 %v1855, %v1747
        %v1858 = vmax.f32 %v1856, %v1753
        %v1859 = vmax.f32 %v1857, %v1759
        %v1860 = vmax.f32 %v1858, %v1765
        %v1861 = vmax.f32 %v1859, %v1771
        %v1862 = vmax.f32 %v1860, %v1777
        %v1863 = vmax.f32 %v1861, %v1783
        %v1864 = vmax.f32 %v1862, %v1789
        %v1865 = vmax.f32 %v1863, %v1795
        %v1866 = vmax.f32 %v1864, %v1801
        %v1867 = vmax.f32 %v1865, %v1807
        %v1868 = vmax.f32 %v1866, %v1813
        %v1869 = vmax.f32 %v1867, %v1819
        %v1870 = vmax.f32 %v1868, %v1825
        %v1871 = vmax.f32 %v1869, %v1831
        %v1872 = vmax.f32 %v1870, %v1837
        %v1873 = vmax.f32 %v1871, %v1872
        %v1874 = vrot.slane %v1873, 4
        %v1875 = vmax.f32 %v1873, %v1874
        %v1876 = vrot.slane %v1875, 2
        %v1877 = vmax.f32 %v1875, %v1876
        %v1878 = vrot.slane %v1877, 1
        %v1879 = vmax.f32 %v1877, %v1878
        %v1880 = vmax.f32 %v1653, %v1665
        %v1881 = vmax.f32 %v1659, %v1671
        %v1882 = vmax.f32 %v1880, %v1677
        %v1883 = vmax.f32 %v1881, %v1683
        %v1884 = vmax.f32 %v1882, %v1689
        %v1885 = vmax.f32 %v1883, %v1695
        %v1886 = vmax.f32 %v1884, %v1701
        %v1887 = vmax.f32 %v1885, %v1707
        %v1888 = vmax.f32 %v1886, %v1713
        %v1889 = vmax.f32 %v1887, %v1719
        %v1890 = vmax.f32 %v1888, %v1725
        %v1891 = vmax.f32 %v1889, %v1731
        %v1892 = vmax.f32 %v1890, %v1737
        %v1893 = vmax.f32 %v1891, %v1743
        %v1894 = vmax.f32 %v1892, %v1749
        %v1895 = vmax.f32 %v1893, %v1755
        %v1896 = vmax.f32 %v1894, %v1761
        %v1897 = vmax.f32 %v1895, %v1767
        %v1898 = vmax.f32 %v1896, %v1773
        %v1899 = vmax.f32 %v1897, %v1779
        %v1900 = vmax.f32 %v1898, %v1785
        %v1901 = vmax.f32 %v1899, %v1791
        %v1902 = vmax.f32 %v1900, %v1797
        %v1903 = vmax.f32 %v1901, %v1803
        %v1904 = vmax.f32 %v1902, %v1809
        %v1905 = vmax.f32 %v1903, %v1815
        %v1906 = vmax.f32 %v1904, %v1821
        %v1907 = vmax.f32 %v1905, %v1827
        %v1908 = vmax.f32 %v1906, %v1833
        %v1909 = vmax.f32 %v1907, %v1839
        %v1910 = vmax.f32 %v1908, %v1909
        %v1911 = vrot.slane %v1910, 4
        %v1912 = vmax.f32 %v1910, %v1911
        %v1913 = vrot.slane %v1912, 2
        %v1914 = vmax.f32 %v1912, %v1913
        %v1915 = vrot.slane %v1914, 1
        %v1916 = vmax.f32 %v1914, %v1915
        %v1919 = vcombine.low %v1879, %v1916
        %v1921 = vunpack.c.l.s4 1966171168
        %v1922 = vunpack.c.0.s8 %v1921
        %v1923 = vlaneseq
        %v1924 = vshrl.u32 %v1923, 7
        %v1925 = vsub.s32 %v1922, %v1924
        %v1926 = vrot.slane %v1919, %v1925
        %v1928 = vunpack.c.l.s4 1966171168
        %v1929 = vunpack.c.0.s8 %v1928
        %v1930 = vlaneseq
        %v1931 = vshrl.u32 %v1930, 7
        %v1932 = vsub.s32 %v1929, %v1931
        %v1933 = vrot.slane %v1926, %v1932
        %v1935 = vmax.f32 %v1842, %v1933
        %v1936 = vsub.f32 %v1842, %v1935
        %v1937 = vmul.f32 %v1936, 1.442695
        %v1938 = vpow.pop %v1937
        %v1940 = vlaneseq
        %v1941 = vshrl.u32 %v1940, 7
        %v1942 = vsub.s32 0, %v1941
        %v1943 = vrot.slane %v1935, %v1942
        %v1944 = vlaneseq
        %v1945 = vshrl.u32 %v1944, 7
        %v1946 = vsub.s32 1, %v1945
        %v1947 = vrot.slane %v1935, %v1946
        %v1950 = vsub.f32 %v1651, %v1943
        %v1951 = vsub.f32 %v1653, %v1947
        %v1952 = vsub.f32 %v1657, %v1943
        %v1953 = vsub.f32 %v1659, %v1947
        %v1954 = vsub.f32 %v1663, %v1943
        %v1955 = vsub.f32 %v1665, %v1947
        %v1956 = vsub.f32 %v1669, %v1943
        %v1957 = vsub.f32 %v1671, %v1947
        %v1958 = vsub.f32 %v1675, %v1943
        %v1959 = vsub.f32 %v1677, %v1947
        %v1960 = vsub.f32 %v1681, %v1943
        %v1961 = vsub.f32 %v1683, %v1947
        %v1962 = vsub.f32 %v1687, %v1943
        %v1963 = vsub.f32 %v1689, %v1947
        %v1964 = vsub.f32 %v1693, %v1943
        %v1965 = vsub.f32 %v1695, %v1947
        %v1966 = vsub.f32 %v1699, %v1943
        %v1967 = vsub.f32 %v1701, %v1947
        %v1968 = vsub.f32 %v1705, %v1943
        %v1969 = vsub.f32 %v1707, %v1947
        %v1970 = vsub.f32 %v1711, %v1943
        %v1971 = vsub.f32 %v1713, %v1947
        %v1972 = vsub.f32 %v1717, %v1943
        %v1973 = vsub.f32 %v1719, %v1947
        %v1974 = vsub.f32 %v1723, %v1943
        %v1975 = vsub.f32 %v1725, %v1947
        %v1976 = vsub.f32 %v1729, %v1943
        %v1977 = vsub.f32 %v1731, %v1947
        %v1978 = vsub.f32 %v1735, %v1943
        %v1979 = vsub.f32 %v1737, %v1947
        %v1980 = vsub.f32 %v1741, %v1943
        %v1981 = vsub.f32 %v1743, %v1947
        %v1982 = vsub.f32 %v1747, %v1943
        %v1983 = vsub.f32 %v1749, %v1947
        %v1984 = vsub.f32 %v1753, %v1943
        %v1985 = vsub.f32 %v1755, %v1947
        %v1986 = vsub.f32 %v1759, %v1943
        %v1987 = vsub.f32 %v1761, %v1947
        %v1988 = vsub.f32 %v1765, %v1943
        %v1989 = vsub.f32 %v1767, %v1947
        %v1990 = vsub.f32 %v1771, %v1943
        %v1991 = vsub.f32 %v1773, %v1947
        %v1992 = vsub.f32 %v1777, %v1943
        %v1993 = vsub.f32 %v1779, %v1947
        %v1994 = vsub.f32 %v1783, %v1943
        %v1995 = vsub.f32 %v1785, %v1947
        %v1996 = vsub.f32 %v1789, %v1943
        %v1997 = vsub.f32 %v1791, %v1947
        %v1998 = vsub.f32 %v1795, %v1943
        %v1999 = vsub.f32 %v1797, %v1947
        %v2000 = vsub.f32 %v1801, %v1943
        %v2001 = vsub.f32 %v1803, %v1947
        %v2002 = vsub.f32 %v1807, %v1943
        %v2003 = vsub.f32 %v1809, %v1947
        %v2004 = vsub.f32 %v1813, %v1943
        %v2005 = vsub.f32 %v1815, %v1947
        %v2006 = vsub.f32 %v1819, %v1943
        %v2007 = vsub.f32 %v1821, %v1947
        %v2008 = vsub.f32 %v1825, %v1943
        %v2009 = vsub.f32 %v1827, %v1947
        %v2010 = vsub.f32 %v1831, %v1943
        %v2011 = vsub.f32 %v1833, %v1947
        %v2012 = vsub.f32 %v1837, %v1943
        %v2013 = vsub.f32 %v1839, %v1947
        %v2014 = vmul.f32 %v1950, 1.442695
        %v2015 = vpow.pop %v2014
        %v2016 = vmul.f32 %v1951, 1.442695
        %v2017 = vpow.pop %v2016
        %v2018 = vmul.f32 %v1952, 1.442695
        %v2019 = vpow.pop %v2018
        %v2020 = vmul.f32 %v1953, 1.442695
        %v2021 = vpow.pop %v2020
        %v2022 = vmul.f32 %v1954, 1.442695
        %v2023 = vpow.pop %v2022
        %v2024 = vmul.f32 %v1955, 1.442695
        %v2025 = vpow.pop %v2024
        %v2026 = vmul.f32 %v1956, 1.442695
        %v2027 = vpow.pop %v2026
        %v2028 = vmul.f32 %v1957, 1.442695
        %v2029 = vpow.pop %v2028
        %v2030 = vmul.f32 %v1958, 1.442695
        %v2031 = vpow.pop %v2030
        %v2032 = vmul.f32 %v1959, 1.442695
        %v2033 = vpow.pop %v2032
        %v2034 = vmul.f32 %v1960, 1.442695
        %v2035 = vpow.pop %v2034
        %v2036 = vmul.f32 %v1961, 1.442695
        %v2037 = vpow.pop %v2036
        %v2038 = vmul.f32 %v1962, 1.442695
        %v2039 = vpow.pop %v2038
        %v2040 = vmul.f32 %v1963, 1.442695
        %v2041 = vpow.pop %v2040
        %v2042 = vmul.f32 %v1964, 1.442695
        %v2043 = vpow.pop %v2042
        %v2044 = vmul.f32 %v1965, 1.442695
        %v2045 = vpow.pop %v2044
        %v2046 = vmul.f32 %v1966, 1.442695
        %v2047 = vpow.pop %v2046
        %v2048 = vmul.f32 %v1967, 1.442695
        %v2049 = vpow.pop %v2048
        %v2050 = vmul.f32 %v1968, 1.442695
        %v2051 = vpow.pop %v2050
        %v2052 = vmul.f32 %v1969, 1.442695
        %v2053 = vpow.pop %v2052
        %v2054 = vmul.f32 %v1970, 1.442695
        %v2055 = vpow.pop %v2054
        %v2056 = vmul.f32 %v1971, 1.442695
        %v2057 = vpow.pop %v2056
        %v2058 = vmul.f32 %v1972, 1.442695
        %v2059 = vpow.pop %v2058
        %v2060 = vmul.f32 %v1973, 1.442695
        %v2061 = vpow.pop %v2060
        %v2062 = vmul.f32 %v1974, 1.442695
        %v2063 = vpow.pop %v2062
        %v2064 = vmul.f32 %v1975, 1.442695
        %v2065 = vpow.pop %v2064
        %v2066 = vmul.f32 %v1976, 1.442695
        %v2067 = vpow.pop %v2066
        %v2068 = vmul.f32 %v1977, 1.442695
        %v2069 = vpow.pop %v2068
        %v2070 = vmul.f32 %v1978, 1.442695
        %v2071 = vpow.pop %v2070
        %v2072 = vmul.f32 %v1979, 1.442695
        %v2073 = vpow.pop %v2072
        %v2074 = vmul.f32 %v1980, 1.442695
        %v2075 = vpow.pop %v2074
        %v2076 = vmul.f32 %v1981, 1.442695
        %v2077 = vpow.pop %v2076
        %v2078 = vmul.f32 %v1982, 1.442695
        %v2079 = vpow.pop %v2078
        %v2080 = vmul.f32 %v1983, 1.442695
        %v2081 = vpow.pop %v2080
        %v2082 = vmul.f32 %v1984, 1.442695
        %v2083 = vpow.pop %v2082
        %v2084 = vmul.f32 %v1985, 1.442695
        %v2085 = vpow.pop %v2084
        %v2086 = vmul.f32 %v1986, 1.442695
        %v2087 = vpow.pop %v2086
        %v2088 = vmul.f32 %v1987, 1.442695
        %v2089 = vpow.pop %v2088
        %v2090 = vmul.f32 %v1988, 1.442695
        %v2091 = vpow.pop %v2090
        %v2092 = vmul.f32 %v1989, 1.442695
        %v2093 = vpow.pop %v2092
        %v2094 = vmul.f32 %v1990, 1.442695
        %v2095 = vpow.pop %v2094
        %v2096 = vmul.f32 %v1991, 1.442695
        %v2097 = vpow.pop %v2096
        %v2098 = vmul.f32 %v1992, 1.442695
        %v2099 = vpow.pop %v2098
        %v2100 = vmul.f32 %v1993, 1.442695
        %v2101 = vpow.pop %v2100
        %v2102 = vmul.f32 %v1994, 1.442695
        %v2103 = vpow.pop %v2102
        %v2104 = vmul.f32 %v1995, 1.442695
        %v2105 = vpow.pop %v2104
        %v2106 = vmul.f32 %v1996, 1.442695
        %v2107 = vpow.pop %v2106
        %v2108 = vmul.f32 %v1997, 1.442695
        %v2109 = vpow.pop %v2108
        %v2110 = vmul.f32 %v1998, 1.442695
        %v2111 = vpow.pop %v2110
        %v2112 = vmul.f32 %v1999, 1.442695
        %v2113 = vpow.pop %v2112
        %v2114 = vmul.f32 %v2000, 1.442695
        %v2115 = vpow.pop %v2114
        %v2116 = vmul.f32 %v2001, 1.442695
        %v2117 = vpow.pop %v2116
        %v2118 = vmul.f32 %v2002, 1.442695
        %v2119 = vpow.pop %v2118
        %v2120 = vmul.f32 %v2003, 1.442695
        %v2121 = vpow.pop %v2120
        %v2122 = vmul.f32 %v2004, 1.442695
        %v2123 = vpow.pop %v2122
        %v2124 = vmul.f32 %v2005, 1.442695
        %v2125 = vpow.pop %v2124
        %v2126 = vmul.f32 %v2006, 1.442695
        %v2127 = vpow.pop %v2126
        %v2128 = vmul.f32 %v2007, 1.442695
        %v2129 = vpow.pop %v2128
        %v2130 = vmul.f32 %v2008, 1.442695
        %v2131 = vpow.pop %v2130
        %v2132 = vmul.f32 %v2009, 1.442695
        %v2133 = vpow.pop %v2132
        %v2134 = vmul.f32 %v2010, 1.442695
        %v2135 = vpow.pop %v2134
        %v2136 = vmul.f32 %v2011, 1.442695
        %v2137 = vpow.pop %v2136
        %v2138 = vmul.f32 %v2012, 1.442695
        %v2139 = vpow.pop %v2138
        %v2140 = vmul.f32 %v2013, 1.442695
        %v2141 = vpow.pop %v2140
        %s2142 = scalar_lea.vmem [#allocation5], 2
        %v2143 = vld [vmem:[%s2142] sm:$0x3]
        %v2144 = vmul.f32 %v1938, %v2143
        %v2145 = vadd.f32 %v2015, %v2019
        %v2146 = vadd.f32 %v2145, %v2023
        %v2147 = vadd.f32 %v2146, %v2027
        %v2148 = vadd.f32 %v2147, %v2031
        %v2149 = vadd.f32 %v2148, %v2035
        %v2150 = vadd.f32 %v2149, %v2039
        %v2151 = vadd.f32 %v2150, %v2043
        %v2152 = vadd.f32 %v2151, %v2047
        %v2153 = vadd.f32 %v2152, %v2051
        %v2154 = vadd.f32 %v2153, %v2055
        %v2155 = vadd.f32 %v2154, %v2059
        %v2156 = vadd.f32 %v2155, %v2063
        %v2157 = vadd.f32 %v2156, %v2067
        %v2158 = vadd.f32 %v2157, %v2071
        %v2159 = vadd.f32 %v2158, %v2075
        %v2160 = vadd.f32 %v2159, %v2079
        %v2161 = vadd.f32 %v2160, %v2083
        %v2162 = vadd.f32 %v2161, %v2087
        %v2163 = vadd.f32 %v2162, %v2091
        %v2164 = vadd.f32 %v2163, %v2095
        %v2165 = vadd.f32 %v2164, %v2099
        %v2166 = vadd.f32 %v2165, %v2103
        %v2167 = vadd.f32 %v2166, %v2107
        %v2168 = vadd.f32 %v2167, %v2111
        %v2169 = vadd.f32 %v2168, %v2115
        %v2170 = vadd.f32 %v2169, %v2119
        %v2171 = vadd.f32 %v2170, %v2123
        %v2172 = vadd.f32 %v2171, %v2127
        %v2173 = vadd.f32 %v2172, %v2131
        %v2174 = vadd.f32 %v2173, %v2135
        %v2175 = vadd.f32 %v2174, %v2139
        %v2176 = vrot.slane %v2175, 4
        %v2177 = vadd.f32 %v2175, %v2176
        %v2178 = vrot.slane %v2177, 2
        %v2179 = vadd.f32 %v2177, %v2178
        %v2180 = vrot.slane %v2179, 1
        %v2181 = vadd.f32 %v2179, %v2180
        %v2182 = vadd.f32 %v2017, %v2021
        %v2183 = vadd.f32 %v2182, %v2025
        %v2184 = vadd.f32 %v2183, %v2029
        %v2185 = vadd.f32 %v2184, %v2033
        %v2186 = vadd.f32 %v2185, %v2037
        %v2187 = vadd.f32 %v2186, %v2041
        %v2188 = vadd.f32 %v2187, %v2045
        %v2189 = vadd.f32 %v2188, %v2049
        %v2190 = vadd.f32 %v2189, %v2053
        %v2191 = vadd.f32 %v2190, %v2057
        %v2192 = vadd.f32 %v2191, %v2061
        %v2193 = vadd.f32 %v2192, %v2065
        %v2194 = vadd.f32 %v2193, %v2069
        %v2195 = vadd.f32 %v2194, %v2073
        %v2196 = vadd.f32 %v2195, %v2077
        %v2197 = vadd.f32 %v2196, %v2081
        %v2198 = vadd.f32 %v2197, %v2085
        %v2199 = vadd.f32 %v2198, %v2089
        %v2200 = vadd.f32 %v2199, %v2093
        %v2201 = vadd.f32 %v2200, %v2097
        %v2202 = vadd.f32 %v2201, %v2101
        %v2203 = vadd.f32 %v2202, %v2105
        %v2204 = vadd.f32 %v2203, %v2109
        %v2205 = vadd.f32 %v2204, %v2113
        %v2206 = vadd.f32 %v2205, %v2117
        %v2207 = vadd.f32 %v2206, %v2121
        %v2208 = vadd.f32 %v2207, %v2125
        %v2209 = vadd.f32 %v2208, %v2129
        %v2210 = vadd.f32 %v2209, %v2133
        %v2211 = vadd.f32 %v2210, %v2137
        %v2212 = vadd.f32 %v2211, %v2141
        %v2213 = vrot.slane %v2212, 4
        %v2214 = vadd.f32 %v2212, %v2213
        %v2215 = vrot.slane %v2214, 2
        %v2216 = vadd.f32 %v2214, %v2215
        %v2217 = vrot.slane %v2216, 1
        %v2218 = vadd.f32 %v2216, %v2217
        %v2221 = vcombine.low %v2181, %v2218
        %v2223 = vunpack.c.l.s4 1966171168
        %v2224 = vunpack.c.0.s8 %v2223
        %v2225 = vlaneseq
        %v2226 = vshrl.u32 %v2225, 7
        %v2227 = vsub.s32 %v2224, %v2226
        %v2228 = vrot.slane %v2221, %v2227
        %v2230 = vunpack.c.l.s4 1966171168
        %v2231 = vunpack.c.0.s8 %v2230
        %v2232 = vlaneseq
        %v2233 = vshrl.u32 %v2232, 7
        %v2234 = vsub.s32 %v2231, %v2233
        %v2235 = vrot.slane %v2228, %v2234
        %v2237 = vadd.f32 %v2144, %v2235
        %2238 = vst.msk [vmem:[%s2142] sm:$0x3] %vm1319, %v2237
        %2239 = vst.msk [vmem:[%s1841] sm:$0x3] %vm1319, %v1935
        %v2242 = vrot.slane %v492, 4
        %v2243 = vrot.slane %v493, 4
        %2246 = vmatprep.subr.mxu0 %v2017
        %2247 = vmatpush1.msra.mxu0 %v2015
        %2248 = vmatprep.subr.mxu0 %v2021
        %2249 = vmatpush1.msra.mxu0 %v2019
        %2250 = vmatprep.subr.mxu0 %v2025
        %2251 = vmatpush1.msra.mxu0 %v2023
        %2252 = vmatprep.subr.mxu0 %v2029
        %2253 = vmatpush1.msra.mxu0 %v2027
        %2254 = vmatprep.subr.mxu0 %v2033
        %2255 = vmatpush1.msra.mxu0 %v2031
        %2256 = vmatprep.subr.mxu0 %v2037
        %2257 = vmatpush1.msra.mxu0 %v2035
        %2258 = vmatprep.subr.mxu0 %v2041
        %2259 = vmatpush1.msra.mxu0 %v2039
        %2260 = vmatprep.subr.mxu0 %v2045
        %2261 = vmatpush1.msra.mxu0 %v2043
        %2262 = vmatprep.subr.mxu0 %v2049
        %2263 = vmatpush1.msra.mxu0 %v2047
        %2264 = vmatprep.subr.mxu0 %v2053
        %2265 = vmatpush1.msra.mxu0 %v2051
        %2266 = vmatprep.subr.mxu0 %v2057
        %2267 = vmatpush1.msra.mxu0 %v2055
        %2268 = vmatprep.subr.mxu0 %v2061
        %2269 = vmatpush1.msra.mxu0 %v2059
        %2270 = vmatprep.subr.mxu0 %v2065
        %2271 = vmatpush1.msra.mxu0 %v2063
        %2272 = vmatprep.subr.mxu0 %v2069
        %2273 = vmatpush1.msra.mxu0 %v2067
        %2274 = vmatprep.subr.mxu0 %v2073
        %2275 = vmatpush1.msra.mxu0 %v2071
        %2276 = vmatprep.subr.mxu0 %v2077
        %2277 = vmatpush1.msra.mxu0 %v2075
        %2278 = vmatprep.subr.mxu0 %v2081
        %2279 = vmatpush1.msra.mxu0 %v2079
        %2280 = vmatprep.subr.mxu0 %v2085
        %2281 = vmatpush1.msra.mxu0 %v2083
        %2282 = vmatprep.subr.mxu0 %v2089
        %2283 = vmatpush1.msra.mxu0 %v2087
        %2284 = vmatprep.subr.mxu0 %v2093
        %2285 = vmatpush1.msra.mxu0 %v2091
        %2286 = vmatprep.subr.mxu0 %v2097
        %2287 = vmatpush1.msra.mxu0 %v2095
        %2288 = vmatprep.subr.mxu0 %v2101
        %2289 = vmatpush1.msra.mxu0 %v2099
        %2290 = vmatprep.subr.mxu0 %v2105
        %2291 = vmatpush1.msra.mxu0 %v2103
        %2292 = vmatprep.subr.mxu0 %v2109
        %2293 = vmatpush1.msra.mxu0 %v2107
        %2294 = vmatprep.subr.mxu0 %v2113
        %2295 = vmatpush1.msra.mxu0 %v2111
        %2296 = vmatprep.subr.mxu0 %v2117
        %2297 = vmatpush1.msra.mxu0 %v2115
        %2298 = vmatprep.subr.mxu0 %v2121
        %2299 = vmatpush1.msra.mxu0 %v2119
        %2300 = vmatprep.subr.mxu0 %v2125
        %2301 = vmatpush1.msra.mxu0 %v2123
        %2302 = vmatprep.subr.mxu0 %v2129
        %2303 = vmatpush1.msra.mxu0 %v2127
        %2304 = vmatprep.subr.mxu0 %v2133
        %2305 = vmatpush1.msra.mxu0 %v2131
        %2306 = vmatprep.subr.mxu0 %v2137
        %2307 = vmatpush1.msra.mxu0 %v2135
        %2308 = vmatprep.subr.mxu0 %v2141
        %2309 = vmatpush1.msra.mxu0 %v2139
        %2310 = vmatprep.mubr.f32.mxu0 %v2243
        %2311 = vmatmul.mubr.f32.gmra.mrb[0].mxu0 %v2242
        %v2312 = vpop.f32.mrb[0].mxu0
        %v2313 = vadd.f32 0.0, %v2312
        %v2314 = vpop.f32.mrb[0].mxu0
        %v2315 = vadd.f32 0.0, %v2314
        %2316 = vdwg.mxu0
        %v2317 = vld [vmem:[#allocation3] sm:$0xf0]
        %v2318 = vld [vmem:[#allocation3 + $0x8] sm:$0xf0]
        %v2320 = vlaneseq
        %v2321 = vshrl.u32 %v2320, 7
        %v2322 = vsub.s32 0, %v2321
        %v2323 = vrot.slane %v1938, %v2322
        %v2324 = vlaneseq
        %v2325 = vshrl.u32 %v2324, 7
        %v2326 = vsub.s32 1, %v2325
        %v2327 = vrot.slane %v1938, %v2326
        %v2330 = vmul.f32 %v2323, %v2317
        %v2331 = vmul.f32 %v2327, %v2318
        %v2334 = vrot.slane %v2313, 4
        %v2335 = vrot.slane %v2315, 4
        %v2338 = vadd.f32 %v2330, %v2334
        %v2339 = vadd.f32 %v2331, %v2335
        %2340 = vst [vmem:[#allocation3] sm:$0xf0] %v2338
        %2341 = vst [vmem:[#allocation3 + $0x8] sm:$0xf0] %v2339
        %p2342 = scmp.eq.s32.totalorder %s35, 1
        // Predicated region
        $region73: #{tpu_custom_call.1} parent=43 // pred_check
          %p2343 = pneg %p2342
        $region74: #{tpu_custom_call.1} parent=43 // pred_check_branch
          %2345 = sbr.rel (%p2343) target = $region76
        $region75: #{tpu_custom_call.1} parent=43 // pred_region
          %v2346 = vld [vmem:[#allocation3] sm:$0xf]
          %v2347 = vld [vmem:[#allocation3 + $0x8] sm:$0xf]
          %v2348 = vld [vmem:[#allocation5] sm:$0x3]
          %v2349 = vrcp.pop %v2348
          %v2350 = vmul.f32 1.0, %v2349
          %v2352 = vlaneseq
          %v2353 = vshrl.u32 %v2352, 7
          %v2354 = vsub.s32 0, %v2353
          %v2355 = vrot.slane %v2350, %v2354
          %v2356 = vlaneseq
          %v2357 = vshrl.u32 %v2356, 7
          %v2358 = vsub.s32 1, %v2357
          %v2359 = vrot.slane %v2350, %v2358
          %v2362 = vmul.f32 %v2346, %v2355
          %v2363 = vmul.f32 %v2347, %v2359
          %v2364 = vld [vmem:[#allocation3] sm:$0xf0]
          %v2365 = vld [vmem:[#allocation3 + $0x8] sm:$0xf0]
          %v2366 = vld [vmem:[%s2142] sm:$0x3]
          %v2367 = vrcp.pop %v2366
          %v2368 = vmul.f32 1.0, %v2367
          %v2370 = vlaneseq
          %v2371 = vshrl.u32 %v2370, 7
          %v2372 = vsub.s32 0, %v2371
          %v2373 = vrot.slane %v2368, %v2372
          %v2374 = vlaneseq
          %v2375 = vshrl.u32 %v2374, 7
          %v2376 = vsub.s32 1, %v2375
          %v2377 = vrot.slane %v2368, %v2376
          %v2380 = vmul.f32 %v2364, %v2373
          %v2381 = vmul.f32 %v2365, %v2377
          %v2382 = vsel %vm657, %v2362, %v2380
          %v2383 = vsel %vm657, %v2363, %v2381
          %v2384 = vld [vmem:[#allocation14] sm:$0xff]
          %v2385 = vld [vmem:[#allocation15] sm:$0xff]
          %2387 = vset.pattern.permute.xlu0 0
          %2388 = vperm.xlu0 %2387, %v2385
          %v2389 = vpop.permute.xlu0 %2388
          %vm2391 = vcmask 64512
          %v2393 = vsel %vm2391, %v2384, 0
          %2395 = vmatprep.subr.mxu0 %v2383
          %2396 = vmatpush1.msra.mxu0 %v2382
          %2397 = vmatprep.subr.mxu0 0.0
          %2398 = vmatpush1.msra.mxu0 0.0
          %2399 = vmatprep.subr.mxu0 0.0
          %2400 = vmatpush1.msra.mxu0 0.0
          %2401 = vmatprep.subr.mxu0 0.0
          %2402 = vmatpush1.msra.mxu0 0.0
          %2403 = vmatprep.subr.mxu0 0.0
          %2404 = vmatpush1.msra.mxu0 0.0
          %2405 = vmatprep.subr.mxu0 0.0
          %2406 = vmatpush1.msra.mxu0 0.0
          %2407 = vmatprep.subr.mxu0 0.0
          %2408 = vmatpush1.msra.mxu0 0.0
          %2409 = vmatprep.subr.mxu0 0.0
          %2410 = vmatpush1.msra.mxu0 0.0
          %2411 = vmatprep.subr.mxu0 0.0
          %2412 = vmatpush1.msra.mxu0 0.0
          %2413 = vmatprep.subr.mxu0 0.0
          %2414 = vmatpush1.msra.mxu0 0.0
          %2415 = vmatprep.subr.mxu0 0.0
          %2416 = vmatpush1.msra.mxu0 0.0
          %2417 = vmatprep.subr.mxu0 0.0
          %2418 = vmatpush1.msra.mxu0 0.0
          %2419 = vmatprep.subr.mxu0 0.0
          %2420 = vmatpush1.msra.mxu0 0.0
          %2421 = vmatprep.subr.mxu0 0.0
          %2422 = vmatpush1.msra.mxu0 0.0
          %2423 = vmatprep.subr.mxu0 0.0
          %2424 = vmatpush1.msra.mxu0 0.0
          %2425 = vmatprep.subr.mxu0 0.0
          %2426 = vmatpush1.msra.mxu0 0.0
          %2427 = vmatprep.subr.mxu0 0.0
          %2428 = vmatpush1.msra.mxu0 0.0
          %2429 = vmatprep.subr.mxu0 0.0
          %2430 = vmatpush1.msra.mxu0 0.0
          %2431 = vmatprep.subr.mxu0 0.0
          %2432 = vmatpush1.msra.mxu0 0.0
          %2433 = vmatprep.subr.mxu0 0.0
          %2434 = vmatpush1.msra.mxu0 0.0
          %2435 = vmatprep.subr.mxu0 0.0
          %2436 = vmatpush1.msra.mxu0 0.0
          %2437 = vmatprep.subr.mxu0 0.0
          %2438 = vmatpush1.msra.mxu0 0.0
          %2439 = vmatprep.subr.mxu0 0.0
          %2440 = vmatpush1.msra.mxu0 0.0
          %2441 = vmatprep.subr.mxu0 0.0
          %2442 = vmatpush1.msra.mxu0 0.0
          %2443 = vmatprep.subr.mxu0 0.0
          %2444 = vmatpush1.msra.mxu0 0.0
          %2445 = vmatprep.subr.mxu0 0.0
          %2446 = vmatpush1.msra.mxu0 0.0
          %2447 = vmatprep.subr.mxu0 0.0
          %2448 = vmatpush1.msra.mxu0 0.0
          %2449 = vmatprep.subr.mxu0 0.0
          %2450 = vmatpush1.msra.mxu0 0.0
          %2451 = vmatprep.subr.mxu0 0.0
          %2452 = vmatpush1.msra.mxu0 0.0
          %2453 = vmatprep.subr.mxu0 0.0
          %2454 = vmatpush1.msra.mxu0 0.0
          %2455 = vmatprep.subr.mxu0 0.0
          %2456 = vmatpush1.msra.mxu0 0.0
          %2457 = vmatprep.subr.mxu0 0.0
          %2458 = vmatpush1.msra.mxu0 0.0
          %2459 = vmatprep.mubr.f32.mxu0 0.0
          %2460 = vmatmul.mubr.f32.gmra.mrb[0].mxu0 %v2393
          %v2461 = vpop.f32.mrb[0].mxu0
          %v2462 = vadd.f32 %v2389, %v2461
          %v2463 = vpop.f32.mrb[0].mxu0
          %v2464 = vadd.f32 %v2389, %v2463
          %2465 = vdwg.mxu0
          %2466 = vst [vmem:[%s386] sm:$0xff] %v2462
          %2467 = vst [vmem:[%s386 + $0x8] sm:$0xff] %v2464
        $region76: #{tpu_custom_call.1} parent=43 // pred_fallthru
          _
        %s2468 = sand.u32 %s197, 1
        %s2469 = scalar_lea.sflag [#allocation8], %s2468
        %s2470 = sand.u32 %s197, 1
        %s2471 = smul.addr %s2470, 16
        %s2472 = scalar_lea.vmem [#allocation17], %s2471
        // Predicated region
        $region77: #{tpu_custom_call.1} parent=43 // pred_check
          %p2473 = pneg %p207
        $region78: #{tpu_custom_call.1} parent=43 // pred_check_branch
          %2475 = sbr.rel (%p2473) target = $region80
        $region79: #{tpu_custom_call.1} parent=43 // pred_region
          %s2476 = smul.u32 2, %s34
          %s2478 = ssub.s32 256, 256
          %2479 = vsyncadd %s2469, %s2478
          %s2480 = smul.addr %s33, 4
          %s2481 = sadd.s32 %s2476, %s2480
          %s2482 = smul.addr %s2481, 128
          %s2483 = scalar_lea.hbm %s6, %s2482
          %s2485 = sshll.u32 %s2472, 4
          %s2486 = int_to_ptr.vmem [resolvable:$true] %s2485
          %2488 = dma.vmem_to_hbm [thread:$0]  %s2486, 256, %s2483, %s2469
        $region80: #{tpu_custom_call.1} parent=43 // pred_fallthru
          _
      $region44: #{tpu_custom_call.1} parent=5 // pred_fallthru
        _
      %p2489 = scmp.le.s32.totalorder 2, %s23
      // Predicated region
      $region81: #{tpu_custom_call.1} parent=5 // pred_check
        %p2490 = pneg %p2489
      $region82: #{tpu_custom_call.1} parent=5 // pred_check_branch
        %2492 = sbr.rel (%p2490) target = $region84
      $region83: #{tpu_custom_call.1} parent=5 // pred_region
        %s2493 = ssub.s32 %s23, 2
        // Predicated region
        $region85: #{tpu_custom_call.1} parent=83 // pred_check
          %p2494 = pneg %p213
        $region86: #{tpu_custom_call.1} parent=83 // pred_check_branch
          %2496 = sbr.rel (%p2494) target = $region88
        $region87: #{tpu_custom_call.1} parent=83 // pred_region
          %s2497 = sand.u32 %s198, 1
          %s2498 = scalar_lea.sflag [#allocation8], %s2497
          %s2499 = sand.u32 %s198, 1
          %s2500 = smul.addr %s2499, 16
          %s2501 = scalar_lea.vmem [#allocation17], %s2500
          %2502 = dma.done %s2498, 256
        $region88: #{tpu_custom_call.1} parent=83 // pred_fallthru
          _
      $region84: #{tpu_custom_call.1} parent=5 // pred_fallthru
        _
    $region6: #{tpu_custom_call.1} parent=1 // loop_footer
      %s27 = sadd.s32 1, %s23
    $region7: #{tpu_custom_call.1} parent=1 // loop_footer_branch
      %22 = sbr.rel target = $region3
    $region8: #{tpu_custom_call.1} parent=1 // loop_exit
      _
    %2503 = vsyncpa [#allocation7], 1
    %s2504 = scalar_lea.sflag [#allocation7], 1
    %2505 = vsyncpa %s2504, 1
    %2506 = vsyncpa [#allocation10], 1
    %s2507 = scalar_lea.sflag [#allocation10], 1
    %2508 = vsyncpa %s2507, 1
    %2509 = vsyncpa [#allocation13], 1
    %2510 = vsyncpa [#allocation16], 1
    %2511 = vsyncpa [#allocation8], 1
    %s2512 = scalar_lea.sflag [#allocation8], 1
    %2513 = vsyncpa %s2512, 1

</llo_original>
